<compile_context>
chip_gen: v7x
topology: tpu7x:2x2x1
jax: 0.10.0
libtpu: 0.0.40
codegen_flags: <defaults>
</compile_context>

<pallas_src>
import functools

import jax
import jax.numpy as jnp
import numpy as np
from jax import lax
from jax.experimental import pallas as pl
from jax.experimental.pallas import tpu as pltpu

_SQRT2 = 1.4142135623730951


def _gelu(x, approximate):
    if approximate:
        # tanh-approx GELU runs on the EUP (nearly free VLIW slot); gated behind a flag because
        # it deviates slightly from torch's exact erf GELU.
        return jax.nn.gelu(x, approximate=True)
    # exact (erf) GELU, matching torch.nn.functional.gelu default (approximate='none')
    return 0.5 * x * (1.0 + lax.erf(x * (1.0 / _SQRT2)))


def _shift_w(h, direction):
    """Shift along the W axis by one column with zero fill.

    direction=+1 returns h[:, x-1, :] (zero at x=0);
    direction=-1 returns h[:, x+1, :] (zero at x=W-1).
    """
    R, W, Ch = h.shape
    z = jnp.zeros((R, 1, Ch), h.dtype)
    if direction > 0:
        return jnp.concatenate([z, h[:, : W - 1, :]], axis=1)
    return jnp.concatenate([h[:, 1:, :], z], axis=1)


def _ff_kernel(xt_ref, xm_ref, xb_ref, w1_ref, wdw_ref, w2_ref, o_ref, *,
               tH, W, C, Ch, nH, approx_gelu):
    j = pl.program_id(1)

    # ---- assemble a (tH + 2)-row halo block; halo rows outside the image are zeroed ----
    x_top = xt_ref[0]                                              # (1, W, C)  bf16
    x_mid = xm_ref[0]                                              # (tH, W, C) bf16
    x_bot = xb_ref[0]                                              # (1, W, C)  bf16
    x_top = jnp.where(j > 0, x_top, jnp.zeros_like(x_top))
    x_bot = jnp.where(j < nH - 1, x_bot, jnp.zeros_like(x_bot))
    x_halo = jnp.concatenate([x_top, x_mid, x_bot], axis=0)        # (tH+2, W, C)

    R = tH + 2
    # ---- 1x1 conv (bf16 MXU operands, f32 accumulate) -> GELU ----
    h = jnp.dot(x_halo.reshape(R * W, C), w1_ref[...],
                preferred_element_type=jnp.float32)                # (R*W, Ch)
    h = _gelu(h, approx_gelu).reshape(R, W, Ch)
    # TODO(synk): on v6e/v7x the depthwise stage could run in bf16 (bf16-native VALU) to halve
    # elementwise op count / vreg footprint; kept in f32 here for accuracy on all generations.

    # ---- 3x3 depthwise conv (stride 1, pad 1, groups=Ch), all in registers ----
    hl = _shift_w(h, +1)                                           # h[:, x-1, :]
    hr = _shift_w(h, -1)                                           # h[:, x+1, :]
    wdw = wdw_ref[...]                                             # (3, 3, Ch) f32
    acc = jnp.zeros((tH, W, Ch), jnp.float32)
    for di in range(3):                                            # unrolled 9-tap MAC
        acc = acc + hl[di:di + tH] * wdw[di, 0]
        acc = acc + h[di:di + tH] * wdw[di, 1]
        acc = acc + hr[di:di + tH] * wdw[di, 2]
    h2 = _gelu(acc, approx_gelu)                                   # (tH, W, Ch)

    # ---- 1x1 conv back down to C ----
    out = jnp.dot(h2.reshape(tH * W, Ch).astype(jnp.bfloat16), w2_ref[...],
                  preferred_element_type=jnp.float32)              # (tH*W, C)
    o_ref[0] = out.reshape(tH, W, C).astype(o_ref.dtype)


def feed_forward(x, w1, w_dw, w2, *, tile_h=32, approx_gelu=False):
    """x: (B,H,W,dim) NHWC; w1: (dim, dim*mult); w_dw: (3,3,dim*mult); w2: (dim*mult, dim)."""
    B, H, W, C = x.shape
    Ch = w1.shape[1]
    out_dtype = x.dtype

    # Balanced tile height (<= tile_h); ragged H handled by zero-padding (exact: see header).
    n_tiles = pl.cdiv(H, max(1, min(tile_h, H)))
    tH = pl.cdiv(H, n_tiles)
    nH = pl.cdiv(H, tH)
    Hp = nH * tH

    xb = x.astype(jnp.bfloat16)            # pre-cast: halves input DMA bytes & VMEM residency
    if Hp != H:
        xb = jnp.pad(xb, ((0, 0), (0, Hp - H), (0, 0), (0, 0)))

    try:
        vmem_limit = int(pltpu.get_tpu_info().vmem_capacity_bytes * 0.75)
    except Exception:
        vmem_limit = None                  # fall back to the compiler default

    # TODO(synk): for very large hidden dims on v7x (64 MiB VMEM), add a Ch-chunk grid axis
    # ("arbitrary") with an f32 output accumulator, single-buffer the constant weight blocks
    # (pipeline_mode=pl.Buffered(1)), and pad C/Ch to lane multiples of 128/256.
    kernel = functools.partial(_ff_kernel, tH=tH, W=W, C=C, Ch=Ch, nH=nH,
                               approx_gelu=approx_gelu)
    out = pl.pallas_call(
        kernel,
        out_shape=jax.ShapeDtypeStruct((B, Hp, W, C), out_dtype),
        grid_spec=pltpu.PrefetchScalarGridSpec(
            num_scalar_prefetch=0,
            grid=(B, nH),
            in_specs=[
                # 1-row top halo (clamped at the border; masked to zero in-kernel)
                pl.BlockSpec((1, 1, W, C),
                             lambda b, j: (b, jnp.maximum(j * tH - 1, 0), 0, 0)),
                # the row tile itself
                pl.BlockSpec((1, tH, W, C), lambda b, j: (b, j, 0, 0)),
                # 1-row bottom halo
                pl.BlockSpec((1, 1, W, C),
                             lambda b, j: (b, jnp.minimum(j * tH + tH, Hp - 1), 0, 0)),
                # weights: constant block index -> fetched once, kept VMEM-resident
                pl.BlockSpec((C, Ch), lambda b, j: (0, 0)),
                pl.BlockSpec((3, 3, Ch), lambda b, j: (0, 0, 0)),
                pl.BlockSpec((Ch, C), lambda b, j: (0, 0)),
            ],
            out_specs=pl.BlockSpec((1, tH, W, C), lambda b, j: (b, j, 0, 0)),
        ),
        compiler_params=pltpu.CompilerParams(
            dimension_semantics=("parallel", "parallel"),
            vmem_limit_bytes=vmem_limit,
        ),
    )(xb, xb, xb, w1.astype(jnp.bfloat16), w_dw.astype(jnp.float32), w2.astype(jnp.bfloat16))

    return out[:, :H] if Hp != H else out


def _ref_feed_forward(x, w1, w_dw, w2):
    """Pure-JAX f32 reference (XLA convs) for correctness checking."""
    Ch = w1.shape[1]
    h = jnp.einsum('bhwc,cd->bhwd', x, w1)
    h = jax.nn.gelu(h, approximate=False)
    k = w_dw.reshape(3, 3, 1, Ch)
    h = lax.conv_general_dilated(
        h, k, window_strides=(1, 1), padding=((1, 1), (1, 1)),
        dimension_numbers=('NHWC', 'HWIO', 'NHWC'), feature_group_count=Ch)
    h = jax.nn.gelu(h, approximate=False)
    return jnp.einsum('bhwd,dc->bhwc', h, w2)


if __name__ == "__main__":
    key = jax.random.PRNGKey(0)

    def make_case(k, B, H, W, dim, mult):
        kx, k1, k2, k3 = jax.random.split(k, 4)
        hidden = dim * mult
        # torch shapes would be (hid,dim,1,1), (hid,1,3,3), (dim,hid,1,1); stored here
        # channels-last as (dim,hid), (3,3,hid), (hid,dim).
        x = jax.random.normal(kx, (B, H, W, dim), jnp.float32)
        w1 = jax.random.normal(k1, (dim, hidden), jnp.float32) * (1.0 / np.sqrt(dim))
        w_dw = jax.random.normal(k2, (3, 3, hidden), jnp.float32) * (1.0 / 3.0)
        w2 = jax.random.normal(k3, (hidden, dim), jnp.float32) * (1.0 / np.sqrt(hidden))
        return x, w1, w_dw, w2

    ka, kb = jax.random.split(key)

    # Case 1: B=2, H=W=16, dim=8, mult=4 — single row tile per image.
    x, w1, w_dw, w2 = make_case(ka, 2, 16, 16, 8, 4)
    out = jax.block_until_ready(feed_forward(x, w1, w_dw, w2))
    ref = _ref_feed_forward(x, w1, w_dw, w2)
    # bf16 MXU operands vs f32 reference -> slightly looser tolerance than pure-f32
    np.testing.assert_allclose(np.asarray(out), np.asarray(ref), atol=5e-2, rtol=5e-2)

    # Case 2: H=20 with tile_h=8 — exercises multi-tile halos, clamping and ragged-H padding.
    x, w1, w_dw, w2 = make_case(kb, 1, 20, 16, 8, 4)
    out = jax.block_until_ready(feed_forward(x, w1, w_dw, w2, tile_h=8))
    ref = _ref_feed_forward(x, w1, w_dw, w2)
    np.testing.assert_allclose(np.asarray(out), np.asarray(ref), atol=5e-2, rtol=5e-2)

    print("KERNEL_OK")
</pallas_src>

<mosaic_0001>
module attributes {stable_mosaic.version = 11 : i64} {
  func.func @_ff_kernel(%arg0: i32, %arg1: i32, %arg2: memref<1x1x16x8xbf16, #tpu.memory_space<vmem>>, %arg3: memref<1x16x16x8xbf16, #tpu.memory_space<vmem>>, %arg4: memref<1x1x16x8xbf16, #tpu.memory_space<vmem>>, %arg5: memref<8x32xbf16, #tpu.memory_space<vmem>>, %arg6: memref<3x3x32xf32, #tpu.memory_space<vmem>>, %arg7: memref<32x8xbf16, #tpu.memory_space<vmem>>, %arg8: memref<1x16x16x8xf32, #tpu.memory_space<vmem>>) attributes {dimension_semantics = [#tpu.dimension_semantics<parallel>, #tpu.dimension_semantics<parallel>], iteration_bounds = array<i64: 2, 1>, scalar_prefetch = 0 : i64, scratch_operands = 0 : i64, tpu.core_type = #tpu.core_type<tc>, window_params = [{transform_indices = @transform_0, window_bounds = array<i64: 1, 1, 16, 8>}, {transform_indices = @transform_1, window_bounds = array<i64: 1, 16, 16, 8>}, {transform_indices = @transform_2, window_bounds = array<i64: 1, 1, 16, 8>}, {pipeline_mode = #tpu.pipeline_mode<synchronous>, transform_indices = @transform_3, window_bounds = array<i64: 8, 32>}, {pipeline_mode = #tpu.pipeline_mode<synchronous>, transform_indices = @transform_4, window_bounds = array<i64: 3, 3, 32>}, {pipeline_mode = #tpu.pipeline_mode<synchronous>, transform_indices = @transform_5, window_bounds = array<i64: 32, 8>}, {transform_indices = @transform_6, window_bounds = array<i64: 1, 16, 16, 8>}]} {
    %c0 = arith.constant 0 : index
    %c0_0 = arith.constant 0 : index
    %c0_1 = arith.constant 0 : index
    %c0_2 = arith.constant 0 : index
    %0 = vector.load %arg2[%c0, %c0_0, %c0_1, %c0_2] : memref<1x1x16x8xbf16, #tpu.memory_space<vmem>>, vector<1x1x16x8xbf16>
    %1 = vector.shape_cast %0 : vector<1x1x16x8xbf16> to vector<1x16x8xbf16>
    %c0_3 = arith.constant 0 : index
    %c0_4 = arith.constant 0 : index
    %c0_5 = arith.constant 0 : index
    %c0_6 = arith.constant 0 : index
    %2 = vector.load %arg3[%c0_3, %c0_4, %c0_5, %c0_6] : memref<1x16x16x8xbf16, #tpu.memory_space<vmem>>, vector<1x16x16x8xbf16>
    %3 = vector.shape_cast %2 : vector<1x16x16x8xbf16> to vector<16x16x8xbf16>
    %c0_7 = arith.constant 0 : index
    %c0_8 = arith.constant 0 : index
    %c0_9 = arith.constant 0 : index
    %c0_10 = arith.constant 0 : index
    %4 = vector.load %arg4[%c0_7, %c0_8, %c0_9, %c0_10] : memref<1x1x16x8xbf16, #tpu.memory_space<vmem>>, vector<1x1x16x8xbf16>
    %5 = vector.shape_cast %4 : vector<1x1x16x8xbf16> to vector<1x16x8xbf16>
    %c0_i32 = arith.constant 0 : i32
    %6 = arith.cmpi sgt, %arg1, %c0_i32 : i32
    %cst = arith.constant 0.000000e+00 : bf16
    %7 = vector.broadcast %cst : bf16 to vector<1x16x8xbf16>
    %8 = arith.select %6, %1, %7 : vector<1x16x8xbf16>
    %c0_i32_11 = arith.constant 0 : i32
    %9 = arith.cmpi slt, %arg1, %c0_i32_11 : i32
    %cst_12 = arith.constant 0.000000e+00 : bf16
    %10 = vector.broadcast %cst_12 : bf16 to vector<1x16x8xbf16>
    %11 = arith.select %9, %5, %10 : vector<1x16x8xbf16>
    %12 = tpu.concatenate %8, %3, %11 in 0 : vector<1x16x8xbf16>, vector<16x16x8xbf16>, vector<1x16x8xbf16> -> vector<18x16x8xbf16>
    %13 = vector.shape_cast %12 : vector<18x16x8xbf16> to vector<288x8xbf16>
    %c0_13 = arith.constant 0 : index
    %c0_14 = arith.constant 0 : index
    %14 = vector.load %arg5[%c0_13, %c0_14] : memref<8x32xbf16, #tpu.memory_space<vmem>>, vector<8x32xbf16>
    %cst_15 = arith.constant dense<0.000000e+00> : vector<288x32xf32>
    %15 = tpu.matmul %13, %14, %cst_15 {dimension_numbers = #tpu.dot_dimension_numbers<[1], [0], [0], [1], [0, 0, 1, 1], [], []>} : vector<288x8xbf16>, vector<8x32xbf16>, vector<288x32xf32> -> vector<288x32xf32>
    %cst_16 = arith.constant 5.000000e-01 : f32
    %16 = vector.broadcast %cst_16 : f32 to vector<288x32xf32>
    %17 = arith.mulf %16, %15 : vector<288x32xf32>
    %cst_17 = arith.constant 0.707106769 : f32
    %18 = vector.broadcast %cst_17 : f32 to vector<288x32xf32>
    %19 = arith.mulf %15, %18 : vector<288x32xf32>
    %20 = math.erf %19 : vector<288x32xf32>
    %cst_18 = arith.constant 1.000000e+00 : f32
    %21 = vector.broadcast %cst_18 : f32 to vector<288x32xf32>
    %22 = arith.addf %21, %20 : vector<288x32xf32>
    %23 = arith.mulf %17, %22 : vector<288x32xf32>
    %24 = vector.shape_cast %23 : vector<288x32xf32> to vector<18x16x32xf32>
    %cst_19 = arith.constant 0.000000e+00 : f32
    %25 = vector.broadcast %cst_19 : f32 to vector<18x1x32xf32>
    %26 = vector.extract_strided_slice %24 {offsets = [0, 0, 0], sizes = [18, 15, 32], strides = [1, 1, 1]} : vector<18x16x32xf32> to vector<18x15x32xf32>
    %27 = tpu.concatenate %25, %26 in 1 : vector<18x1x32xf32>, vector<18x15x32xf32> -> vector<18x16x32xf32>
    %cst_20 = arith.constant 0.000000e+00 : f32
    %28 = vector.broadcast %cst_20 : f32 to vector<18x1x32xf32>
    %29 = vector.extract_strided_slice %24 {offsets = [0, 1, 0], sizes = [18, 15, 32], strides = [1, 1, 1]} : vector<18x16x32xf32> to vector<18x15x32xf32>
    %30 = tpu.concatenate %29, %28 in 1 : vector<18x15x32xf32>, vector<18x1x32xf32> -> vector<18x16x32xf32>
    %c0_21 = arith.constant 0 : index
    %c0_22 = arith.constant 0 : index
    %c0_23 = arith.constant 0 : index
    %31 = vector.load %arg6[%c0_21, %c0_22, %c0_23] : memref<3x3x32xf32, #tpu.memory_space<vmem>>, vector<3x3x32xf32>
    %cst_24 = arith.constant 0.000000e+00 : f32
    %32 = vector.broadcast %cst_24 : f32 to vector<16x16x32xf32>
    %33 = vector.extract_strided_slice %27 {offsets = [0, 0, 0], sizes = [16, 16, 32], strides = [1, 1, 1]} : vector<18x16x32xf32> to vector<16x16x32xf32>
    %34 = vector.extract_strided_slice %31 {offsets = [0, 0, 0], sizes = [1, 1, 32], strides = [1, 1, 1]} : vector<3x3x32xf32> to vector<1x1x32xf32>
    %35 = vector.shape_cast %34 : vector<1x1x32xf32> to vector<32xf32>
    %36 = vector.shape_cast %35 : vector<32xf32> to vector<1x1x32xf32>
    %37 = vector.broadcast %36 : vector<1x1x32xf32> to vector<16x16x32xf32>
    %38 = arith.mulf %33, %37 : vector<16x16x32xf32>
    %39 = arith.addf %32, %38 : vector<16x16x32xf32>
    %40 = vector.extract_strided_slice %24 {offsets = [0, 0, 0], sizes = [16, 16, 32], strides = [1, 1, 1]} : vector<18x16x32xf32> to vector<16x16x32xf32>
    %41 = vector.extract_strided_slice %31 {offsets = [0, 1, 0], sizes = [1, 1, 32], strides = [1, 1, 1]} : vector<3x3x32xf32> to vector<1x1x32xf32>
    %42 = vector.shape_cast %41 : vector<1x1x32xf32> to vector<32xf32>
    %43 = vector.shape_cast %42 : vector<32xf32> to vector<1x1x32xf32>
    %44 = vector.broadcast %43 : vector<1x1x32xf32> to vector<16x16x32xf32>
    %45 = arith.mulf %40, %44 : vector<16x16x32xf32>
    %46 = arith.addf %39, %45 : vector<16x16x32xf32>
    %47 = vector.extract_strided_slice %30 {offsets = [0, 0, 0], sizes = [16, 16, 32], strides = [1, 1, 1]} : vector<18x16x32xf32> to vector<16x16x32xf32>
    %48 = vector.extract_strided_slice %31 {offsets = [0, 2, 0], sizes = [1, 1, 32], strides = [1, 1, 1]} : vector<3x3x32xf32> to vector<1x1x32xf32>
    %49 = vector.shape_cast %48 : vector<1x1x32xf32> to vector<32xf32>
    %50 = vector.shape_cast %49 : vector<32xf32> to vector<1x1x32xf32>
    %51 = vector.broadcast %50 : vector<1x1x32xf32> to vector<16x16x32xf32>
    %52 = arith.mulf %47, %51 : vector<16x16x32xf32>
    %53 = arith.addf %46, %52 : vector<16x16x32xf32>
    %54 = vector.extract_strided_slice %27 {offsets = [1, 0, 0], sizes = [16, 16, 32], strides = [1, 1, 1]} : vector<18x16x32xf32> to vector<16x16x32xf32>
    %55 = vector.extract_strided_slice %31 {offsets = [1, 0, 0], sizes = [1, 1, 32], strides = [1, 1, 1]} : vector<3x3x32xf32> to vector<1x1x32xf32>
    %56 = vector.shape_cast %55 : vector<1x1x32xf32> to vector<32xf32>
    %57 = vector.shape_cast %56 : vector<32xf32> to vector<1x1x32xf32>
    %58 = vector.broadcast %57 : vector<1x1x32xf32> to vector<16x16x32xf32>
    %59 = arith.mulf %54, %58 : vector<16x16x32xf32>
    %60 = arith.addf %53, %59 : vector<16x16x32xf32>
    %61 = vector.extract_strided_slice %24 {offsets = [1, 0, 0], sizes = [16, 16, 32], strides = [1, 1, 1]} : vector<18x16x32xf32> to vector<16x16x32xf32>
    %62 = vector.extract_strided_slice %31 {offsets = [1, 1, 0], sizes = [1, 1, 32], strides = [1, 1, 1]} : vector<3x3x32xf32> to vector<1x1x32xf32>
    %63 = vector.shape_cast %62 : vector<1x1x32xf32> to vector<32xf32>
    %64 = vector.shape_cast %63 : vector<32xf32> to vector<1x1x32xf32>
    %65 = vector.broadcast %64 : vector<1x1x32xf32> to vector<16x16x32xf32>
    %66 = arith.mulf %61, %65 : vector<16x16x32xf32>
    %67 = arith.addf %60, %66 : vector<16x16x32xf32>
    %68 = vector.extract_strided_slice %30 {offsets = [1, 0, 0], sizes = [16, 16, 32], strides = [1, 1, 1]} : vector<18x16x32xf32> to vector<16x16x32xf32>
    %69 = vector.extract_strided_slice %31 {offsets = [1, 2, 0], sizes = [1, 1, 32], strides = [1, 1, 1]} : vector<3x3x32xf32> to vector<1x1x32xf32>
    %70 = vector.shape_cast %69 : vector<1x1x32xf32> to vector<32xf32>
    %71 = vector.shape_cast %70 : vector<32xf32> to vector<1x1x32xf32>
    %72 = vector.broadcast %71 : vector<1x1x32xf32> to vector<16x16x32xf32>
    %73 = arith.mulf %68, %72 : vector<16x16x32xf32>
    %74 = arith.addf %67, %73 : vector<16x16x32xf32>
    %75 = vector.extract_strided_slice %27 {offsets = [2, 0, 0], sizes = [16, 16, 32], strides = [1, 1, 1]} : vector<18x16x32xf32> to vector<16x16x32xf32>
    %76 = vector.extract_strided_slice %31 {offsets = [2, 0, 0], sizes = [1, 1, 32], strides = [1, 1, 1]} : vector<3x3x32xf32> to vector<1x1x32xf32>
    %77 = vector.shape_cast %76 : vector<1x1x32xf32> to vector<32xf32>
    %78 = vector.shape_cast %77 : vector<32xf32> to vector<1x1x32xf32>
    %79 = vector.broadcast %78 : vector<1x1x32xf32> to vector<16x16x32xf32>
    %80 = arith.mulf %75, %79 : vector<16x16x32xf32>
    %81 = arith.addf %74, %80 : vector<16x16x32xf32>
    %82 = vector.extract_strided_slice %24 {offsets = [2, 0, 0], sizes = [16, 16, 32], strides = [1, 1, 1]} : vector<18x16x32xf32> to vector<16x16x32xf32>
    %83 = vector.extract_strided_slice %31 {offsets = [2, 1, 0], sizes = [1, 1, 32], strides = [1, 1, 1]} : vector<3x3x32xf32> to vector<1x1x32xf32>
    %84 = vector.shape_cast %83 : vector<1x1x32xf32> to vector<32xf32>
    %85 = vector.shape_cast %84 : vector<32xf32> to vector<1x1x32xf32>
    %86 = vector.broadcast %85 : vector<1x1x32xf32> to vector<16x16x32xf32>
    %87 = arith.mulf %82, %86 : vector<16x16x32xf32>
    %88 = arith.addf %81, %87 : vector<16x16x32xf32>
    %89 = vector.extract_strided_slice %30 {offsets = [2, 0, 0], sizes = [16, 16, 32], strides = [1, 1, 1]} : vector<18x16x32xf32> to vector<16x16x32xf32>
    %90 = vector.extract_strided_slice %31 {offsets = [2, 2, 0], sizes = [1, 1, 32], strides = [1, 1, 1]} : vector<3x3x32xf32> to vector<1x1x32xf32>
    %91 = vector.shape_cast %90 : vector<1x1x32xf32> to vector<32xf32>
    %92 = vector.shape_cast %91 : vector<32xf32> to vector<1x1x32xf32>
    %93 = vector.broadcast %92 : vector<1x1x32xf32> to vector<16x16x32xf32>
    %94 = arith.mulf %89, %93 : vector<16x16x32xf32>
    %95 = arith.addf %88, %94 : vector<16x16x32xf32>
    %cst_25 = arith.constant 5.000000e-01 : f32
    %96 = vector.broadcast %cst_25 : f32 to vector<16x16x32xf32>
    %97 = arith.mulf %96, %95 : vector<16x16x32xf32>
    %cst_26 = arith.constant 0.707106769 : f32
    %98 = vector.broadcast %cst_26 : f32 to vector<16x16x32xf32>
    %99 = arith.mulf %95, %98 : vector<16x16x32xf32>
    %100 = math.erf %99 : vector<16x16x32xf32>
    %cst_27 = arith.constant 1.000000e+00 : f32
    %101 = vector.broadcast %cst_27 : f32 to vector<16x16x32xf32>
    %102 = arith.addf %101, %100 : vector<16x16x32xf32>
    %103 = arith.mulf %97, %102 : vector<16x16x32xf32>
    %104 = vector.shape_cast %103 : vector<16x16x32xf32> to vector<256x32xf32>
    %105 = arith.truncf %104 : vector<256x32xf32> to vector<256x32xbf16>
    %c0_28 = arith.constant 0 : index
    %c0_29 = arith.constant 0 : index
    %106 = vector.load %arg7[%c0_28, %c0_29] : memref<32x8xbf16, #tpu.memory_space<vmem>>, vector<32x8xbf16>
    %cst_30 = arith.constant dense<0.000000e+00> : vector<256x8xf32>
    %107 = tpu.matmul %105, %106, %cst_30 {dimension_numbers = #tpu.dot_dimension_numbers<[1], [0], [0], [1], [0, 0, 1, 1], [], []>} : vector<256x32xbf16>, vector<32x8xbf16>, vector<256x8xf32> -> vector<256x8xf32>
    %108 = vector.shape_cast %107 : vector<256x8xf32> to vector<16x16x8xf32>
    %c0_31 = arith.constant 0 : index
    %c0_32 = arith.constant 0 : index
    %c0_33 = arith.constant 0 : index
    %c0_34 = arith.constant 0 : index
    %109 = vector.load %arg8[%c0_31, %c0_32, %c0_33, %c0_34] : memref<1x16x16x8xf32, #tpu.memory_space<vmem>>, vector<1x16x16x8xf32>
    %110 = vector.shape_cast %109 : vector<1x16x16x8xf32> to vector<16x16x8xf32>
    %111 = vector.shape_cast %108 : vector<16x16x8xf32> to vector<1x16x16x8xf32>
    tpu.vector_store %arg8[%c0_31, %c0_32, %c0_33, %c0_34], %111 {strides = array<i32>} : memref<1x16x16x8xf32, #tpu.memory_space<vmem>>, vector<1x16x16x8xf32>,
    return
  }
  func.func @transform_0(%arg0: i32, %arg1: i32) -> (i32, i32, i32, i32) {
    %c16_i32 = arith.constant 16 : i32
    %0 = arith.muli %arg1, %c16_i32 : i32
    %c1_i32 = arith.constant 1 : i32
    %1 = arith.subi %0, %c1_i32 : i32
    %c0_i32 = arith.constant 0 : i32
    %2 = arith.maxsi %1, %c0_i32 : i32
    %c0_i32_0 = arith.constant 0 : i32
    %c0_i32_1 = arith.constant 0 : i32
    %c0_i32_2 = arith.constant 0 : i32
    return %arg0, %2, %c0_i32_0, %c0_i32_1 : i32, i32, i32, i32
  }
  func.func @transform_1(%arg0: i32, %arg1: i32) -> (i32, i32, i32, i32) {
    %c0_i32 = arith.constant 0 : i32
    %c0_i32_0 = arith.constant 0 : i32
    %c0_i32_1 = arith.constant 0 : i32
    return %arg0, %arg1, %c0_i32, %c0_i32_0 : i32, i32, i32, i32
  }
  func.func @transform_2(%arg0: i32, %arg1: i32) -> (i32, i32, i32, i32) {
    %c16_i32 = arith.constant 16 : i32
    %0 = arith.muli %arg1, %c16_i32 : i32
    %c16_i32_0 = arith.constant 16 : i32
    %1 = arith.addi %0, %c16_i32_0 : i32
    %c15_i32 = arith.constant 15 : i32
    %2 = arith.minsi %1, %c15_i32 : i32
    %c0_i32 = arith.constant 0 : i32
    %c0_i32_1 = arith.constant 0 : i32
    %c0_i32_2 = arith.constant 0 : i32
    return %arg0, %2, %c0_i32, %c0_i32_1 : i32, i32, i32, i32
  }
  func.func @transform_3(%arg0: i32, %arg1: i32) -> (i32, i32) {
    %c0_i32 = arith.constant 0 : i32
    %c0_i32_0 = arith.constant 0 : i32
    %c0_i32_1 = arith.constant 0 : i32
    return %c0_i32, %c0_i32_0 : i32, i32
  }
  func.func @transform_4(%arg0: i32, %arg1: i32) -> (i32, i32, i32) {
    %c0_i32 = arith.constant 0 : i32
    %c0_i32_0 = arith.constant 0 : i32
    %c0_i32_1 = arith.constant 0 : i32
    %c0_i32_2 = arith.constant 0 : i32
    return %c0_i32, %c0_i32_0, %c0_i32_1 : i32, i32, i32
  }
  func.func @transform_5(%arg0: i32, %arg1: i32) -> (i32, i32) {
    %c0_i32 = arith.constant 0 : i32
    %c0_i32_0 = arith.constant 0 : i32
    %c0_i32_1 = arith.constant 0 : i32
    return %c0_i32, %c0_i32_0 : i32, i32
  }
  func.func @transform_6(%arg0: i32, %arg1: i32) -> (i32, i32, i32, i32) {
    %c0_i32 = arith.constant 0 : i32
    %c0_i32_0 = arith.constant 0 : i32
    %c0_i32_1 = arith.constant 0 : i32
    return %arg0, %arg1, %c0_i32, %c0_i32_0 : i32, i32, i32, i32
  }
}

</mosaic_0001>

<llo_original>
// kernel: tpu_custom_call.1
$region0: #{tpu_custom_call.1}
  #allocation0 [shape = 'u32[]', space=smem, size = 0x4, offset = 0x4, fixed_abs, tag = 'smem constant byte address 0x4 - core index']
  #allocation1 [shape = 'u32[144,128]{1,0:T(1,128)}', space=vmem, size = 0x12000, scoped, tag = 'internal scratch']
  %s0 = inlined_call_operand.vmem [shape: bf16[2,16,16,8], index: 0, kind: input, shape index: {}]
  %s1 = inlined_call_operand.vmem [shape: bf16[2,16,16,8], index: 1, kind: input, shape index: {}]
  %s2 = inlined_call_operand.vmem [shape: bf16[2,16,16,8], index: 2, kind: input, shape index: {}]
  %s3 = inlined_call_operand.vmem [shape: bf16[8,32], index: 3, kind: input, shape index: {}]
  %s4 = inlined_call_operand.vmem [shape: f32[3,3,32], index: 4, kind: input, shape index: {}]
  %s5 = inlined_call_operand.vmem [shape: bf16[32,8], index: 5, kind: input, shape index: {}]
  %s6 = inlined_call_operand.vmem [shape: f32[2,16,16,8], index: 6, kind: output, shape index: {}]
  %s7 = sld [smem:[#allocation0]]
  $region57: #{tpu_custom_call.1} parent=0
    _
  %s9 = ssub.s32 1, %s7
  %s10 = scalar_select 0, %s9, %s7
  loop: start=0, step=1, limit=4
  $region2: #{tpu_custom_call.1} parent=0 // loop_pre_header
    _
  $region3: #{tpu_custom_call.1} parent=0 // loop_header
    %s12 = sphi 0, %s16
    %p13 = scmp.ge.s32.totalorder %s12, 4
    %s19 = sphi 0, %s31
    %s20 = sphi 0, %s27
    %s21 = sphi 0, %s19
    %s22 = sphi 0, %s20
    %s23 = sphi 0, %s21
    %s24 = sphi 0, %s22
    %s44 = sphi 0, %s46
    %s47 = sphi 0, %s44
    %s48 = sphi 0, %s47
    %s64 = sphi 0, %s48
    %s72 = sphi 0, %s74
    %s75 = sphi 0, %s72
    %s76 = sphi 0, %s75
    %s92 = sphi 0, %s76
    %s108 = sphi 0, %s110
    %s111 = sphi 0, %s108
    %s112 = sphi 0, %s111
    %s128 = sphi 0, %s112
    %s132 = sphi 0, %s132
    %s134 = sphi 0, %s132
    %s135 = sphi 0, %s134
    %s149 = sphi 0, %s135
    %s153 = sphi 0, %s153
    %s155 = sphi 0, %s153
    %s156 = sphi 0, %s155
    %s170 = sphi 0, %s156
    %s174 = sphi 0, %s174
    %s176 = sphi 0, %s174
    %s177 = sphi 0, %s176
    %s191 = sphi 0, %s177
    %s199 = sphi 0, %s201
    %s202 = sphi 0, %s199
    %s203 = sphi 0, %s202
    %s219 = sphi 0, %s203
  $region4: #{tpu_custom_call.1} parent=0 // loop_header_branch
    %15 = sbr.rel (%p13) target = $region8
  $region5: #{tpu_custom_call.1} parent=0 // loop_body
    %s17 = ssub.s32 %s12, 1
    %s18 = ssub.s32 %s12, 2
    %s25 = sadd.s32 1, %s20
    %p26 = scmp.ge.s32.totalorder %s25, 1
    %s27 = scalar_select %p26, 0, %s25
    %s28 = sadd.s32 1, %s19
    %s29 = scalar_select %p26, %s28, %s19
    %p30 = scmp.ge.s32.totalorder %s29, 2
    %s31 = scalar_select %p30, 0, %s29
    %s32 = smul.u32 %s20, 16
    %s33 = ssub.s32 %s32, 1
    %p34 = scmp.gt.s32.totalorder %s33, 0
    %s35 = scalar_select %p34, %s33, 0
    %s36 = smul.u32 %s27, 16
    %s37 = ssub.s32 %s36, 1
    %p38 = scmp.gt.s32.totalorder %s37, 0
    %s39 = scalar_select %p38, %s37, 0
    %s40 = ssub.s32 %s19, %s31
    %s41 = ssub.s32 %s35, %s39
    %s42 = sor.u32 %s40, %s41
    %p43 = scmp.eq.s32.totalorder %s42, 0
    %s45 = sadd.s32 %s44, 1
    %s46 = scalar_select %p43, %s44, %s45
    %p49 = pneg %p43
    %p50 = scmp.eq.s32.totalorder %s12, 1
    %p51 = por %p49, %p50
    %p52 = scmp.ne.s32.totalorder %s44, %s47
    %p53 = scmp.eq.s32.totalorder %s12, 0
    %p54 = por %p52, %p53
    %p55 = scmp.ne.s32.totalorder %s44, %s47
    %p56 = scmp.eq.s32.totalorder %s17, 1
    %p57 = por %p55, %p56
    %p58 = scmp.ne.s32.totalorder %s47, %s48
    %p59 = scmp.eq.s32.totalorder %s17, 0
    %p60 = por %p58, %p59
    %p61 = scmp.ne.s32.totalorder %s47, %s48
    %p62 = scmp.eq.s32.totalorder %s18, 1
    %p63 = por %p61, %p62
    %p65 = scmp.ne.s32.totalorder %s48, %s64
    %p66 = scmp.eq.s32.totalorder %s18, 0
    %p67 = por %p65, %p66
    %s68 = ssub.s32 %s19, %s31
    %s69 = ssub.s32 %s20, %s27
    %s70 = sor.u32 %s68, %s69
    %p71 = scmp.eq.s32.totalorder %s70, 0
    %s73 = sadd.s32 %s72, 1
    %s74 = scalar_select %p71, %s72, %s73
    %p77 = pneg %p71
    %p78 = scmp.eq.s32.totalorder %s12, 1
    %p79 = por %p77, %p78
    %p80 = scmp.ne.s32.totalorder %s72, %s75
    %p81 = scmp.eq.s32.totalorder %s12, 0
    %p82 = por %p80, %p81
    %p83 = scmp.ne.s32.totalorder %s72, %s75
    %p84 = scmp.eq.s32.totalorder %s17, 1
    %p85 = por %p83, %p84
    %p86 = scmp.ne.s32.totalorder %s75, %s76
    %p87 = scmp.eq.s32.totalorder %s17, 0
    %p88 = por %p86, %p87
    %p89 = scmp.ne.s32.totalorder %s75, %s76
    %p90 = scmp.eq.s32.totalorder %s18, 1
    %p91 = por %p89, %p90
    %p93 = scmp.ne.s32.totalorder %s76, %s92
    %p94 = scmp.eq.s32.totalorder %s18, 0
    %p95 = por %p93, %p94
    %s96 = smul.u32 %s20, 16
    %s97 = sadd.s32 %s96, 16
    %p98 = scmp.lt.s32.totalorder %s97, 15
    %s99 = scalar_select %p98, %s97, 15
    %s100 = smul.u32 %s27, 16
    %s101 = sadd.s32 %s100, 16
    %p102 = scmp.lt.s32.totalorder %s101, 15
    %s103 = scalar_select %p102, %s101, 15
    %s104 = ssub.s32 %s19, %s31
    %s105 = ssub.s32 %s99, %s103
    %s106 = sor.u32 %s104, %s105
    %p107 = scmp.eq.s32.totalorder %s106, 0
    %s109 = sadd.s32 %s108, 1
    %s110 = scalar_select %p107, %s108, %s109
    %p113 = pneg %p107
    %p114 = scmp.eq.s32.totalorder %s12, 1
    %p115 = por %p113, %p114
    %p116 = scmp.ne.s32.totalorder %s108, %s111
    %p117 = scmp.eq.s32.totalorder %s12, 0
    %p118 = por %p116, %p117
    %p119 = scmp.ne.s32.totalorder %s108, %s111
    %p120 = scmp.eq.s32.totalorder %s17, 1
    %p121 = por %p119, %p120
    %p122 = scmp.ne.s32.totalorder %s111, %s112
    %p123 = scmp.eq.s32.totalorder %s17, 0
    %p124 = por %p122, %p123
    %p125 = scmp.ne.s32.totalorder %s111, %s112
    %p126 = scmp.eq.s32.totalorder %s18, 1
    %p127 = por %p125, %p126
    %p129 = scmp.ne.s32.totalorder %s112, %s128
    %p130 = scmp.eq.s32.totalorder %s18, 0
    %p131 = por %p129, %p130
    %s133 = sadd.s32 %s132, 1
    %p136 = scmp.eq.s32.totalorder %s12, 1
    %p137 = scmp.ne.s32.totalorder %s132, %s134
    %p138 = scmp.eq.s32.totalorder %s12, 0
    %p139 = por %p137, %p138
    %p140 = scmp.ne.s32.totalorder %s132, %s134
    %p141 = scmp.eq.s32.totalorder %s17, 1
    %p142 = por %p140, %p141
    %p143 = scmp.ne.s32.totalorder %s134, %s135
    %p144 = scmp.eq.s32.totalorder %s17, 0
    %p145 = por %p143, %p144
    %p146 = scmp.ne.s32.totalorder %s134, %s135
    %p147 = scmp.eq.s32.totalorder %s18, 1
    %p148 = por %p146, %p147
    %p150 = scmp.ne.s32.totalorder %s135, %s149
    %p151 = scmp.eq.s32.totalorder %s18, 0
    %p152 = por %p150, %p151
    %s154 = sadd.s32 %s153, 1
    %p157 = scmp.eq.s32.totalorder %s12, 1
    %p158 = scmp.ne.s32.totalorder %s153, %s155
    %p159 = scmp.eq.s32.totalorder %s12, 0
    %p160 = por %p158, %p159
    %p161 = scmp.ne.s32.totalorder %s153, %s155
    %p162 = scmp.eq.s32.totalorder %s17, 1
    %p163 = por %p161, %p162
    %p164 = scmp.ne.s32.totalorder %s155, %s156
    %p165 = scmp.eq.s32.totalorder %s17, 0
    %p166 = por %p164, %p165
    %p167 = scmp.ne.s32.totalorder %s155, %s156
    %p168 = scmp.eq.s32.totalorder %s18, 1
    %p169 = por %p167, %p168
    %p171 = scmp.ne.s32.totalorder %s156, %s170
    %p172 = scmp.eq.s32.totalorder %s18, 0
    %p173 = por %p171, %p172
    %s175 = sadd.s32 %s174, 1
    %p178 = scmp.eq.s32.totalorder %s12, 1
    %p179 = scmp.ne.s32.totalorder %s174, %s176
    %p180 = scmp.eq.s32.totalorder %s12, 0
    %p181 = por %p179, %p180
    %p182 = scmp.ne.s32.totalorder %s174, %s176
    %p183 = scmp.eq.s32.totalorder %s17, 1
    %p184 = por %p182, %p183
    %p185 = scmp.ne.s32.totalorder %s176, %s177
    %p186 = scmp.eq.s32.totalorder %s17, 0
    %p187 = por %p185, %p186
    %p188 = scmp.ne.s32.totalorder %s176, %s177
    %p189 = scmp.eq.s32.totalorder %s18, 1
    %p190 = por %p188, %p189
    %p192 = scmp.ne.s32.totalorder %s177, %s191
    %p193 = scmp.eq.s32.totalorder %s18, 0
    %p194 = por %p192, %p193
    %s195 = ssub.s32 %s19, %s31
    %s196 = ssub.s32 %s20, %s27
    %s197 = sor.u32 %s195, %s196
    %p198 = scmp.eq.s32.totalorder %s197, 0
    %s200 = sadd.s32 %s199, 1
    %s201 = scalar_select %p198, %s199, %s200
    %p204 = pneg %p198
    %p205 = scmp.eq.s32.totalorder %s12, 1
    %p206 = por %p204, %p205
    %p207 = scmp.ne.s32.totalorder %s199, %s202
    %p208 = scmp.eq.s32.totalorder %s12, 0
    %p209 = por %p207, %p208
    %p210 = scmp.ne.s32.totalorder %s199, %s202
    %p211 = scmp.eq.s32.totalorder %s17, 1
    %p212 = por %p210, %p211
    %p213 = scmp.ne.s32.totalorder %s202, %s203
    %p214 = scmp.eq.s32.totalorder %s17, 0
    %p215 = por %p213, %p214
    %p216 = scmp.ne.s32.totalorder %s202, %s203
    %p217 = scmp.eq.s32.totalorder %s18, 1
    %p218 = por %p216, %p217
    %p220 = scmp.ne.s32.totalorder %s203, %s219
    %p221 = scmp.eq.s32.totalorder %s18, 0
    %p222 = por %p220, %p221
    %p223 = scmp.le.s32.totalorder 1, %s12
    %p224 = scmp.lt.s32.totalorder %s12, 3
    %p225 = pnand %p223, %p224
    %p226 = pneg %p225
    // Predicated region
    $region9: #{tpu_custom_call.1} parent=5 // pred_check
      _
    $region10: #{tpu_custom_call.1} parent=5 // pred_check_branch
      %228 = sbr.rel (%p225) target = $region12
    $region11: #{tpu_custom_call.1} parent=5 // pred_region
      %s229 = ssub.s32 %s12, 1
      // Predicated region
      $region13: #{tpu_custom_call.1} parent=11 // pred_check
        %p230 = pneg %p145
      $region14: #{tpu_custom_call.1} parent=11 // pred_check_branch
        %232 = sbr.rel (%p230) target = $region16
      $region15: #{tpu_custom_call.1} parent=11 // pred_region
        _
      $region16: #{tpu_custom_call.1} parent=11 // pred_fallthru
        _
      // Predicated region
      $region17: #{tpu_custom_call.1} parent=11 // pred_check
        %p233 = pneg %p166
      $region18: #{tpu_custom_call.1} parent=11 // pred_check_branch
        %235 = sbr.rel (%p233) target = $region20
      $region19: #{tpu_custom_call.1} parent=11 // pred_region
        _
      $region20: #{tpu_custom_call.1} parent=11 // pred_fallthru
        _
      // Predicated region
      $region21: #{tpu_custom_call.1} parent=11 // pred_check
        %p236 = pneg %p187
      $region22: #{tpu_custom_call.1} parent=11 // pred_check_branch
        %238 = sbr.rel (%p236) target = $region24
      $region23: #{tpu_custom_call.1} parent=11 // pred_region
        _
      $region24: #{tpu_custom_call.1} parent=11 // pred_fallthru
        _
    $region12: #{tpu_custom_call.1} parent=5 // pred_fallthru
      _
    %p239 = scmp.lt.s32.totalorder %s12, 2
    // Predicated region
    $region25: #{tpu_custom_call.1} parent=5 // pred_check
      %p240 = pneg %p239
    $region26: #{tpu_custom_call.1} parent=5 // pred_check_branch
      %242 = sbr.rel (%p240) target = $region28
    $region27: #{tpu_custom_call.1} parent=5 // pred_region
      // Predicated region
      $region29: #{tpu_custom_call.1} parent=27 // pred_check
        %p243 = pneg %p54
      $region30: #{tpu_custom_call.1} parent=27 // pred_check_branch
        %245 = sbr.rel (%p243) target = $region32
      $region31: #{tpu_custom_call.1} parent=27 // pred_region
        %s246 = smul.u32 %s20, 16
        %s247 = ssub.s32 %s246, 1
        %p248 = scmp.gt.s32.totalorder %s247, 0
        %s249 = scalar_select %p248, %s247, 0
        %p250 = scmp.lt.s32.totalorder %s19, 1
        %s251 = scalar_select %p250, %s19, 1
        %p252 = scmp.lt.s32.totalorder %s249, 15
        %s253 = scalar_select %p252, %s249, 15
        %s254 = smul.addr %s253, 2
        %s255 = smul.addr %s251, 32
        %s256 = sadd.s32 %s254, %s255
        %s257 = smul.addr %s256, 4
        %s258 = scalar_lea.vmem %s0, %s257
        %s259 = smul.u32 %s20, 16
        %s260 = ssub.s32 %s259, 1
        %p261 = scmp.gt.s32.totalorder %s260, 0
        %s262 = scalar_select %p261, %s260, 0
      $region32: #{tpu_custom_call.1} parent=27 // pred_fallthru
        _
      // Predicated region
      $region33: #{tpu_custom_call.1} parent=27 // pred_check
        %p263 = pneg %p82
      $region34: #{tpu_custom_call.1} parent=27 // pred_check_branch
        %265 = sbr.rel (%p263) target = $region36
      $region35: #{tpu_custom_call.1} parent=27 // pred_region
        %s266 = smul.u32 16, %s20
        %p267 = scmp.lt.s32.totalorder %s19, 1
        %s268 = scalar_select %p267, %s19, 1
        %p269 = scmp.lt.s32.totalorder %s266, 15
        %s270 = scalar_select %p269, %s266, 15
        %s271 = smul.addr %s270, 2
        %s272 = smul.addr %s268, 32
        %s273 = sadd.s32 %s271, %s272
        %s274 = smul.addr %s273, 4
        %s275 = scalar_lea.vmem %s1, %s274
        %s276 = smul.u32 16, %s20
      $region36: #{tpu_custom_call.1} parent=27 // pred_fallthru
        _
      // Predicated region
      $region37: #{tpu_custom_call.1} parent=27 // pred_check
        %p277 = pneg %p118
      $region38: #{tpu_custom_call.1} parent=27 // pred_check_branch
        %279 = sbr.rel (%p277) target = $region40
      $region39: #{tpu_custom_call.1} parent=27 // pred_region
        %s280 = smul.u32 %s20, 16
        %s281 = sadd.s32 %s280, 16
        %p282 = scmp.lt.s32.totalorder %s281, 15
        %s283 = scalar_select %p282, %s281, 15
        %p284 = scmp.lt.s32.totalorder %s19, 1
        %s285 = scalar_select %p284, %s19, 1
        %p286 = scmp.lt.s32.totalorder %s283, 15
        %s287 = scalar_select %p286, %s283, 15
        %s288 = smul.addr %s287, 2
        %s289 = smul.addr %s285, 32
        %s290 = sadd.s32 %s288, %s289
        %s291 = smul.addr %s290, 4
        %s292 = scalar_lea.vmem %s2, %s291
        %s293 = smul.u32 %s20, 16
        %s294 = sadd.s32 %s293, 16
        %p295 = scmp.lt.s32.totalorder %s294, 15
        %s296 = scalar_select %p295, %s294, 15
      $region40: #{tpu_custom_call.1} parent=27 // pred_fallthru
        _
    $region28: #{tpu_custom_call.1} parent=5 // pred_fallthru
      _
    %p297 = scmp.le.s32.totalorder 1, %s12
    %p298 = scmp.lt.s32.totalorder %s12, 3
    %p299 = pnand %p297, %p298
    %p300 = pneg %p299
    // Predicated region
    $region41: #{tpu_custom_call.1} parent=5 // pred_check
      _
    $region42: #{tpu_custom_call.1} parent=5 // pred_check_branch
      %302 = sbr.rel (%p299) target = $region44
    $region43: #{tpu_custom_call.1} parent=5 // pred_region
      %s303 = ssub.s32 %s12, 1
      %s304 = smul.u32 %s22, 16
      %s305 = ssub.s32 %s304, 1
      %p306 = scmp.gt.s32.totalorder %s305, 0
      %s307 = scalar_select %p306, %s305, 0
      %p308 = scmp.lt.s32.totalorder %s21, 1
      %s309 = scalar_select %p308, %s21, 1
      %p310 = scmp.lt.s32.totalorder %s307, 15
      %s311 = scalar_select %p310, %s307, 15
      %s312 = smul.addr %s311, 2
      %s313 = smul.addr %s309, 32
      %s314 = sadd.s32 %s312, %s313
      %s315 = smul.addr %s314, 4
      %s316 = scalar_lea.vmem %s0, %s315
      %p317 = pneg %p60
      %p318 = pneg %p57
      %s319 = smul.u32 16, %s22
      %p320 = scmp.lt.s32.totalorder %s21, 1
      %s321 = scalar_select %p320, %s21, 1
      %p322 = scmp.lt.s32.totalorder %s319, 15
      %s323 = scalar_select %p322, %s319, 15
      %s324 = smul.addr %s323, 2
      %s325 = smul.addr %s321, 32
      %s326 = sadd.s32 %s324, %s325
      %s327 = smul.addr %s326, 4
      %s328 = scalar_lea.vmem %s1, %s327
      %p329 = pneg %p88
      %p330 = pneg %p85
      %s331 = smul.u32 %s22, 16
      %s332 = sadd.s32 %s331, 16
      %p333 = scmp.lt.s32.totalorder %s332, 15
      %s334 = scalar_select %p333, %s332, 15
      %p335 = scmp.lt.s32.totalorder %s21, 1
      %s336 = scalar_select %p335, %s21, 1
      %p337 = scmp.lt.s32.totalorder %s334, 15
      %s338 = scalar_select %p337, %s334, 15
      %s339 = smul.addr %s338, 2
      %s340 = smul.addr %s336, 32
      %s341 = sadd.s32 %s339, %s340
      %s342 = smul.addr %s341, 4
      %s343 = scalar_lea.vmem %s2, %s342
      %p344 = pneg %p124
      %p345 = pneg %p121
      %p346 = pneg %p145
      %p347 = pneg %p142
      %p348 = pneg %p166
      %p349 = pneg %p163
      %p350 = pneg %p187
      %p351 = pneg %p184
      %p352 = pneg %p215
      %p353 = pneg %p212
      %s354 = smul.u32 16, %s22
      %p355 = scmp.lt.s32.totalorder %s21, 1
      %s356 = scalar_select %p355, %s21, 1
      %p357 = scmp.lt.s32.totalorder %s354, 15
      %s358 = scalar_select %p357, %s354, 15
      %s359 = smul.addr %s358, 2
      %s360 = smul.addr %s356, 32
      %s361 = sadd.s32 %s359, %s360
      %s362 = smul.addr %s361, 8
      %s363 = scalar_lea.vmem %s6, %s362
      %s364 = smul.u32 %s22, 16
      %s365 = ssub.s32 %s364, 1
      %p366 = scmp.gt.s32.totalorder %s365, 0
      %s367 = scalar_select %p366, %s365, 0
      %p368 = scmp.lt.s32.totalorder %s21, 1
      %s369 = scalar_select %p368, %s21, 1
      %p370 = scmp.lt.s32.totalorder %s367, 15
      %s371 = scalar_select %p370, %s367, 15
      %s372 = smul.addr %s371, 2
      %s373 = smul.addr %s369, 32
      %s374 = sadd.s32 %s372, %s373
      %s375 = smul.addr %s374, 4
      %s376 = scalar_lea.vmem %s0, %s375
      %s377 = smul.u32 %s22, 16
      %s378 = ssub.s32 %s377, 1
      %p379 = scmp.gt.s32.totalorder %s378, 0
      %s380 = scalar_select %p379, %s378, 0
      %s381 = smul.u32 16, %s22
      %p382 = scmp.lt.s32.totalorder %s21, 1
      %s383 = scalar_select %p382, %s21, 1
      %p384 = scmp.lt.s32.totalorder %s381, 15
      %s385 = scalar_select %p384, %s381, 15
      %s386 = smul.addr %s385, 2
      %s387 = smul.addr %s383, 32
      %s388 = sadd.s32 %s386, %s387
      %s389 = smul.addr %s388, 4
      %s390 = scalar_lea.vmem %s1, %s389
      %s391 = smul.u32 16, %s22
      %s392 = smul.u32 %s22, 16
      %s393 = sadd.s32 %s392, 16
      %p394 = scmp.lt.s32.totalorder %s393, 15
      %s395 = scalar_select %p394, %s393, 15
      %p396 = scmp.lt.s32.totalorder %s21, 1
      %s397 = scalar_select %p396, %s21, 1
      %p398 = scmp.lt.s32.totalorder %s395, 15
      %s399 = scalar_select %p398, %s395, 15
      %s400 = smul.addr %s399, 2
      %s401 = smul.addr %s397, 32
      %s402 = sadd.s32 %s400, %s401
      %s403 = smul.addr %s402, 4
      %s404 = scalar_lea.vmem %s2, %s403
      %s405 = smul.u32 %s22, 16
      %s406 = sadd.s32 %s405, 16
      %p407 = scmp.lt.s32.totalorder %s406, 15
      %s408 = scalar_select %p407, %s406, 15
      %s409 = smul.u32 16, %s22
      %p410 = scmp.lt.s32.totalorder %s21, 1
      %s411 = scalar_select %p410, %s21, 1
      %p412 = scmp.lt.s32.totalorder %s409, 15
      %s413 = scalar_select %p412, %s409, 15
      %s414 = smul.addr %s413, 2
      %s415 = smul.addr %s411, 32
      %s416 = sadd.s32 %s414, %s415
      %s417 = smul.addr %s416, 8
      %s418 = scalar_lea.vmem %s6, %s417
      %s419 = smul.u32 16, %s22
      %v421 = vld [vmem:[%s376] sm:$0xf]
      %v422 = vld [vmem:[%s376 + $0x4] sm:$0xf]
      %v423 = vld [vmem:[%s390] sm:$0xf]
      %v424 = vld [vmem:[%s390 + $0x4] sm:$0xf]
      %v425 = vld [vmem:[%s390 + $0x8] sm:$0xf]
      %v426 = vld [vmem:[%s390 + $0xc] sm:$0xf]
      %v427 = vld [vmem:[%s390 + $0x10] sm:$0xf]
      %v428 = vld [vmem:[%s390 + $0x14] sm:$0xf]
      %v429 = vld [vmem:[%s390 + $0x18] sm:$0xf]
      %v430 = vld [vmem:[%s390 + $0x1c] sm:$0xf]
      %v431 = vld [vmem:[%s390 + $0x20] sm:$0xf]
      %v432 = vld [vmem:[%s390 + $0x24] sm:$0xf]
      %v433 = vld [vmem:[%s390 + $0x28] sm:$0xf]
      %v434 = vld [vmem:[%s390 + $0x2c] sm:$0xf]
      %v435 = vld [vmem:[%s390 + $0x30] sm:$0xf]
      %v436 = vld [vmem:[%s390 + $0x34] sm:$0xf]
      %v437 = vld [vmem:[%s390 + $0x38] sm:$0xf]
      %v438 = vld [vmem:[%s390 + $0x3c] sm:$0xf]
      %v439 = vld [vmem:[%s390 + $0x40] sm:$0xf]
      %v440 = vld [vmem:[%s390 + $0x44] sm:$0xf]
      %v441 = vld [vmem:[%s390 + $0x48] sm:$0xf]
      %v442 = vld [vmem:[%s390 + $0x4c] sm:$0xf]
      %v443 = vld [vmem:[%s390 + $0x50] sm:$0xf]
      %v444 = vld [vmem:[%s390 + $0x54] sm:$0xf]
      %v445 = vld [vmem:[%s390 + $0x58] sm:$0xf]
      %v446 = vld [vmem:[%s390 + $0x5c] sm:$0xf]
      %v447 = vld [vmem:[%s390 + $0x60] sm:$0xf]
      %v448 = vld [vmem:[%s390 + $0x64] sm:$0xf]
      %v449 = vld [vmem:[%s390 + $0x68] sm:$0xf]
      %v450 = vld [vmem:[%s390 + $0x6c] sm:$0xf]
      %v451 = vld [vmem:[%s390 + $0x70] sm:$0xf]
      %v452 = vld [vmem:[%s390 + $0x74] sm:$0xf]
      %v453 = vld [vmem:[%s390 + $0x78] sm:$0xf]
      %v454 = vld [vmem:[%s390 + $0x7c] sm:$0xf]
      %v455 = vld [vmem:[%s404] sm:$0xf]
      %v456 = vld [vmem:[%s404 + $0x4] sm:$0xf]
      %p457 = scmp.gt.s32.totalorder %s22, 0
      %s458 = scalar_select %p457, 1, 0
      %v459 = vstv %s458
      %vm460 = vcmp.eq.s32.totalorder %v459, 1
      %v461 = vsel %vm460, %v421, 0
      %v462 = vsel %vm460, %v422, 0
      %p463 = scmp.lt.s32.totalorder %s22, 0
      %s464 = scalar_select %p463, 1, 0
      %v465 = vstv %s464
      %vm466 = vcmp.eq.s32.totalorder %v465, 1
      %v467 = vsel %vm466, %v455, 0
      %v468 = vsel %vm466, %v456, 0
      %v469 = vld [vmem:[%s3] sm:$0xf]
      %v506 = vunpack.c.l.b16 %v461
      %v507 = vunpack.c.l.b16 %v462
      %v508 = vunpack.c.l.b16 %v423
      %v509 = vunpack.c.l.b16 %v424
      %v510 = vunpack.c.l.b16 %v425
      %v511 = vunpack.c.l.b16 %v426
      %v512 = vunpack.c.l.b16 %v427
      %v513 = vunpack.c.l.b16 %v428
      %v514 = vunpack.c.l.b16 %v429
      %v515 = vunpack.c.l.b16 %v430
      %v516 = vunpack.c.l.b16 %v431
      %v517 = vunpack.c.l.b16 %v432
      %v518 = vunpack.c.l.b16 %v433
      %v519 = vunpack.c.l.b16 %v434
      %v520 = vunpack.c.l.b16 %v435
      %v521 = vunpack.c.l.b16 %v436
      %v522 = vunpack.c.l.b16 %v437
      %v523 = vunpack.c.l.b16 %v438
      %v524 = vunpack.c.l.b16 %v439
      %v525 = vunpack.c.l.b16 %v440
      %v526 = vunpack.c.l.b16 %v441
      %v527 = vunpack.c.l.b16 %v442
      %v528 = vunpack.c.l.b16 %v443
      %v529 = vunpack.c.l.b16 %v444
      %v530 = vunpack.c.l.b16 %v445
      %v531 = vunpack.c.l.b16 %v446
      %v532 = vunpack.c.l.b16 %v447
      %v533 = vunpack.c.l.b16 %v448
      %v534 = vunpack.c.l.b16 %v449
      %v535 = vunpack.c.l.b16 %v450
      %v536 = vunpack.c.l.b16 %v451
      %v537 = vunpack.c.l.b16 %v452
      %v538 = vunpack.c.l.b16 %v453
      %v539 = vunpack.c.l.b16 %v454
      %v540 = vunpack.c.l.b16 %v467
      %v541 = vunpack.c.l.b16 %v468
      %v542 = vpack.c.b16 %v507, %v506
      %v543 = vpack.c.b16 %v509, %v508
      %v544 = vpack.c.b16 %v511, %v510
      %v545 = vpack.c.b16 %v513, %v512
      %v546 = vpack.c.b16 %v515, %v514
      %v547 = vpack.c.b16 %v517, %v516
      %v548 = vpack.c.b16 %v519, %v518
      %v549 = vpack.c.b16 %v521, %v520
      %v550 = vpack.c.b16 %v523, %v522
      %v551 = vpack.c.b16 %v525, %v524
      %v552 = vpack.c.b16 %v527, %v526
      %v553 = vpack.c.b16 %v529, %v528
      %v554 = vpack.c.b16 %v531, %v530
      %v555 = vpack.c.b16 %v533, %v532
      %v556 = vpack.c.b16 %v535, %v534
      %v557 = vpack.c.b16 %v537, %v536
      %v558 = vpack.c.b16 %v539, %v538
      %v559 = vpack.c.b16 %v541, %v540
      %vm560 = vcmask 64512
      %v562 = vsel %vm560, %v542, 0
      %v565 = vsel %vm560, %v543, 0
      %v568 = vsel %vm560, %v544, 0
      %v571 = vsel %vm560, %v545, 0
      %v574 = vsel %vm560, %v546, 0
      %v577 = vsel %vm560, %v547, 0
      %v580 = vsel %vm560, %v548, 0
      %v583 = vsel %vm560, %v549, 0
      %v586 = vsel %vm560, %v550, 0
      %v589 = vsel %vm560, %v551, 0
      %v592 = vsel %vm560, %v552, 0
      %v595 = vsel %vm560, %v553, 0
      %v598 = vsel %vm560, %v554, 0
      %v601 = vsel %vm560, %v555, 0
      %v604 = vsel %vm560, %v556, 0
      %v607 = vsel %vm560, %v557, 0
      %v610 = vsel %vm560, %v558, 0
      %v613 = vsel %vm560, %v559, 0
      %vm615 = vcmask 1043456
      %v617 = vsel %vm615, %v469, 0
      %619 = vmatprep.subr.bf16.mxu0 0
      %620 = vmatpush1.bf16.msra.mxu0 %v617
      %621 = vmatprep.subr.bf16.mxu0 0
      %622 = vmatpush1.bf16.msra.mxu0 0
      %623 = vmatprep.subr.bf16.mxu0 0
      %624 = vmatpush1.bf16.msra.mxu0 0
      %625 = vmatprep.subr.bf16.mxu0 0
      %626 = vmatpush1.bf16.msra.mxu0 0
      %627 = vmatprep.subr.bf16.mxu0 0
      %628 = vmatpush1.bf16.msra.mxu0 0
      %629 = vmatprep.subr.bf16.mxu0 0
      %630 = vmatpush1.bf16.msra.mxu0 0
      %631 = vmatprep.subr.bf16.mxu0 0
      %632 = vmatpush1.bf16.msra.mxu0 0
      %633 = vmatprep.subr.bf16.mxu0 0
      %634 = vmatpush1.bf16.msra.mxu0 0
      %635 = vmatprep.subr.bf16.mxu0 0
      %636 = vmatpush1.bf16.msra.mxu0 0
      %637 = vmatprep.subr.bf16.mxu0 0
      %638 = vmatpush1.bf16.msra.mxu0 0
      %639 = vmatprep.subr.bf16.mxu0 0
      %640 = vmatpush1.bf16.msra.mxu0 0
      %641 = vmatprep.subr.bf16.mxu0 0
      %642 = vmatpush1.bf16.msra.mxu0 0
      %643 = vmatprep.subr.bf16.mxu0 0
      %644 = vmatpush1.bf16.msra.mxu0 0
      %645 = vmatprep.subr.bf16.mxu0 0
      %646 = vmatpush1.bf16.msra.mxu0 0
      %647 = vmatprep.subr.bf16.mxu0 0
      %648 = vmatpush1.bf16.msra.mxu0 0
      %649 = vmatprep.subr.bf16.mxu0 0
      %650 = vmatpush1.bf16.msra.mxu0 0
      %651 = vmatprep.mubr.bf16.mxu0 0
      %652 = vmatmul.mubr.bf16.gmra.mrb[0].mxu0 %v562
      %v653 = vpop.f32.mrb[0].mxu0
      %v654 = vadd.f32 0.0, %v653
      %v655 = vpop.f32.mrb[0].mxu0
      %v656 = vpop.f32.mrb[0].mxu0
      %v657 = vadd.f32 0.0, %v656
      %v658 = vpop.f32.mrb[0].mxu0
      %659 = vmatprep.mubr.bf16.mxu0 0
      %660 = vmatmul.mubr.bf16.gmra.mrb[0].mxu0 %v565
      %v661 = vpop.f32.mrb[0].mxu0
      %v662 = vadd.f32 0.0, %v661
      %v663 = vpop.f32.mrb[0].mxu0
      %v664 = vpop.f32.mrb[0].mxu0
      %v665 = vadd.f32 0.0, %v664
      %v666 = vpop.f32.mrb[0].mxu0
      %667 = vmatprep.mubr.bf16.mxu0 0
      %668 = vmatmul.mubr.bf16.gmra.mrb[0].mxu0 %v568
      %v669 = vpop.f32.mrb[0].mxu0
      %v670 = vadd.f32 0.0, %v669
      %v671 = vpop.f32.mrb[0].mxu0
      %v672 = vpop.f32.mrb[0].mxu0
      %v673 = vadd.f32 0.0, %v672
      %v674 = vpop.f32.mrb[0].mxu0
      %675 = vmatprep.mubr.bf16.mxu0 0
      %676 = vmatmul.mubr.bf16.gmra.mrb[0].mxu0 %v571
      %v677 = vpop.f32.mrb[0].mxu0
      %v678 = vadd.f32 0.0, %v677
      %v679 = vpop.f32.mrb[0].mxu0
      %v680 = vpop.f32.mrb[0].mxu0
      %v681 = vadd.f32 0.0, %v680
      %v682 = vpop.f32.mrb[0].mxu0
      %683 = vmatprep.mubr.bf16.mxu0 0
      %684 = vmatmul.mubr.bf16.gmra.mrb[0].mxu0 %v574
      %v685 = vpop.f32.mrb[0].mxu0
      %v686 = vadd.f32 0.0, %v685
      %v687 = vpop.f32.mrb[0].mxu0
      %v688 = vpop.f32.mrb[0].mxu0
      %v689 = vadd.f32 0.0, %v688
      %v690 = vpop.f32.mrb[0].mxu0
      %691 = vmatprep.mubr.bf16.mxu0 0
      %692 = vmatmul.mubr.bf16.gmra.mrb[0].mxu0 %v577
      %v693 = vpop.f32.mrb[0].mxu0
      %v694 = vadd.f32 0.0, %v693
      %v695 = vpop.f32.mrb[0].mxu0
      %v696 = vpop.f32.mrb[0].mxu0
      %v697 = vadd.f32 0.0, %v696
      %v698 = vpop.f32.mrb[0].mxu0
      %699 = vmatprep.mubr.bf16.mxu0 0
      %700 = vmatmul.mubr.bf16.gmra.mrb[0].mxu0 %v580
      %v701 = vpop.f32.mrb[0].mxu0
      %v702 = vadd.f32 0.0, %v701
      %v703 = vpop.f32.mrb[0].mxu0
      %v704 = vpop.f32.mrb[0].mxu0
      %v705 = vadd.f32 0.0, %v704
      %v706 = vpop.f32.mrb[0].mxu0
      %707 = vmatprep.mubr.bf16.mxu0 0
      %708 = vmatmul.mubr.bf16.gmra.mrb[0].mxu0 %v583
      %v709 = vpop.f32.mrb[0].mxu0
      %v710 = vadd.f32 0.0, %v709
      %v711 = vpop.f32.mrb[0].mxu0
      %v712 = vpop.f32.mrb[0].mxu0
      %v713 = vadd.f32 0.0, %v712
      %v714 = vpop.f32.mrb[0].mxu0
      %715 = vmatprep.mubr.bf16.mxu0 0
      %716 = vmatmul.mubr.bf16.gmra.mrb[0].mxu0 %v586
      %v717 = vpop.f32.mrb[0].mxu0
      %v718 = vadd.f32 0.0, %v717
      %v719 = vpop.f32.mrb[0].mxu0
      %v720 = vpop.f32.mrb[0].mxu0
      %v721 = vadd.f32 0.0, %v720
      %v722 = vpop.f32.mrb[0].mxu0
      %723 = vmatprep.mubr.bf16.mxu0 0
      %724 = vmatmul.mubr.bf16.gmra.mrb[0].mxu0 %v589
      %v725 = vpop.f32.mrb[0].mxu0
      %v726 = vadd.f32 0.0, %v725
      %v727 = vpop.f32.mrb[0].mxu0
      %v728 = vpop.f32.mrb[0].mxu0
      %v729 = vadd.f32 0.0, %v728
      %v730 = vpop.f32.mrb[0].mxu0
      %731 = vmatprep.mubr.bf16.mxu0 0
      %732 = vmatmul.mubr.bf16.gmra.mrb[0].mxu0 %v592
      %v733 = vpop.f32.mrb[0].mxu0
      %v734 = vadd.f32 0.0, %v733
      %v735 = vpop.f32.mrb[0].mxu0
      %v736 = vpop.f32.mrb[0].mxu0
      %v737 = vadd.f32 0.0, %v736
      %v738 = vpop.f32.mrb[0].mxu0
      %739 = vmatprep.mubr.bf16.mxu0 0
      %740 = vmatmul.mubr.bf16.gmra.mrb[0].mxu0 %v595
      %v741 = vpop.f32.mrb[0].mxu0
      %v742 = vadd.f32 0.0, %v741
      %v743 = vpop.f32.mrb[0].mxu0
      %v744 = vpop.f32.mrb[0].mxu0
      %v745 = vadd.f32 0.0, %v744
      %v746 = vpop.f32.mrb[0].mxu0
      %747 = vmatprep.mubr.bf16.mxu0 0
      %748 = vmatmul.mubr.bf16.gmra.mrb[0].mxu0 %v598
      %v749 = vpop.f32.mrb[0].mxu0
      %v750 = vadd.f32 0.0, %v749
      %v751 = vpop.f32.mrb[0].mxu0
      %v752 = vpop.f32.mrb[0].mxu0
      %v753 = vadd.f32 0.0, %v752
      %v754 = vpop.f32.mrb[0].mxu0
      %755 = vmatprep.mubr.bf16.mxu0 0
      %756 = vmatmul.mubr.bf16.gmra.mrb[0].mxu0 %v601
      %v757 = vpop.f32.mrb[0].mxu0
      %v758 = vadd.f32 0.0, %v757
      %v759 = vpop.f32.mrb[0].mxu0
      %v760 = vpop.f32.mrb[0].mxu0
      %v761 = vadd.f32 0.0, %v760
      %v762 = vpop.f32.mrb[0].mxu0
      %763 = vmatprep.mubr.bf16.mxu0 0
      %764 = vmatmul.mubr.bf16.gmra.mrb[0].mxu0 %v604
      %v765 = vpop.f32.mrb[0].mxu0
      %v766 = vadd.f32 0.0, %v765
      %v767 = vpop.f32.mrb[0].mxu0
      %v768 = vpop.f32.mrb[0].mxu0
      %v769 = vadd.f32 0.0, %v768
      %v770 = vpop.f32.mrb[0].mxu0
      %771 = vmatprep.mubr.bf16.mxu0 0
      %772 = vmatmul.mubr.bf16.gmra.mrb[0].mxu0 %v607
      %v773 = vpop.f32.mrb[0].mxu0
      %v774 = vadd.f32 0.0, %v773
      %v775 = vpop.f32.mrb[0].mxu0
      %v776 = vpop.f32.mrb[0].mxu0
      %v777 = vadd.f32 0.0, %v776
      %v778 = vpop.f32.mrb[0].mxu0
      %779 = vmatprep.mubr.bf16.mxu0 0
      %780 = vmatmul.mubr.bf16.gmra.mrb[0].mxu0 %v610
      %v781 = vpop.f32.mrb[0].mxu0
      %v782 = vadd.f32 0.0, %v781
      %v783 = vpop.f32.mrb[0].mxu0
      %v784 = vpop.f32.mrb[0].mxu0
      %v785 = vadd.f32 0.0, %v784
      %v786 = vpop.f32.mrb[0].mxu0
      %787 = vmatprep.mubr.bf16.mxu0 0
      %788 = vmatmul.mubr.bf16.gmra.mrb[0].mxu0 %v613
      %v789 = vpop.f32.mrb[0].mxu0
      %v790 = vadd.f32 0.0, %v789
      %v791 = vpop.f32.mrb[0].mxu0
      %v792 = vpop.f32.mrb[0].mxu0
      %v793 = vadd.f32 0.0, %v792
      %v794 = vpop.f32.mrb[0].mxu0
      %795 = vdwg.mxu0
      %v796 = vmul.f32 %v654, 0.5
      %v797 = vmul.f32 %v657, 0.5
      %v798 = vmul.f32 %v662, 0.5
      %v799 = vmul.f32 %v665, 0.5
      %v800 = vmul.f32 %v670, 0.5
      %v801 = vmul.f32 %v673, 0.5
      %v802 = vmul.f32 %v678, 0.5
      %v803 = vmul.f32 %v681, 0.5
      %v804 = vmul.f32 %v686, 0.5
      %v805 = vmul.f32 %v689, 0.5
      %v806 = vmul.f32 %v694, 0.5
      %v807 = vmul.f32 %v697, 0.5
      %v808 = vmul.f32 %v702, 0.5
      %v809 = vmul.f32 %v705, 0.5
      %v810 = vmul.f32 %v710, 0.5
      %v811 = vmul.f32 %v713, 0.5
      %v812 = vmul.f32 %v718, 0.5
      %v813 = vmul.f32 %v721, 0.5
      %v814 = vmul.f32 %v726, 0.5
      %v815 = vmul.f32 %v729, 0.5
      %v816 = vmul.f32 %v734, 0.5
      %v817 = vmul.f32 %v737, 0.5
      %v818 = vmul.f32 %v742, 0.5
      %v819 = vmul.f32 %v745, 0.5
      %v820 = vmul.f32 %v750, 0.5
      %v821 = vmul.f32 %v753, 0.5
      %v822 = vmul.f32 %v758, 0.5
      %v823 = vmul.f32 %v761, 0.5
      %v824 = vmul.f32 %v766, 0.5
      %v825 = vmul.f32 %v769, 0.5
      %v826 = vmul.f32 %v774, 0.5
      %v827 = vmul.f32 %v777, 0.5
      %v828 = vmul.f32 %v782, 0.5
      %v829 = vmul.f32 %v785, 0.5
      %v830 = vmul.f32 %v790, 0.5
      %v831 = vmul.f32 %v793, 0.5
      %v832 = vmul.f32 %v654, 0.70710677
      %v833 = vmul.f32 %v657, 0.70710677
      %v834 = vmul.f32 %v662, 0.70710677
      %v835 = vmul.f32 %v665, 0.70710677
      %v836 = vmul.f32 %v670, 0.70710677
      %v837 = vmul.f32 %v673, 0.70710677
      %v838 = vmul.f32 %v678, 0.70710677
      %v839 = vmul.f32 %v681, 0.70710677
      %v840 = vmul.f32 %v686, 0.70710677
      %v841 = vmul.f32 %v689, 0.70710677
      %v842 = vmul.f32 %v694, 0.70710677
      %v843 = vmul.f32 %v697, 0.70710677
      %v844 = vmul.f32 %v702, 0.70710677
      %v845 = vmul.f32 %v705, 0.70710677
      %v846 = vmul.f32 %v710, 0.70710677
      %v847 = vmul.f32 %v713, 0.70710677
      %v848 = vmul.f32 %v718, 0.70710677
      %v849 = vmul.f32 %v721, 0.70710677
      %v850 = vmul.f32 %v726, 0.70710677
      %v851 = vmul.f32 %v729, 0.70710677
      %v852 = vmul.f32 %v734, 0.70710677
      %v853 = vmul.f32 %v737, 0.70710677
      %v854 = vmul.f32 %v742, 0.70710677
      %v855 = vmul.f32 %v745, 0.70710677
      %v856 = vmul.f32 %v750, 0.70710677
      %v857 = vmul.f32 %v753, 0.70710677
      %v858 = vmul.f32 %v758, 0.70710677
      %v859 = vmul.f32 %v761, 0.70710677
      %v860 = vmul.f32 %v766, 0.70710677
      %v861 = vmul.f32 %v769, 0.70710677
      %v862 = vmul.f32 %v774, 0.70710677
      %v863 = vmul.f32 %v777, 0.70710677
      %v864 = vmul.f32 %v782, 0.70710677
      %v865 = vmul.f32 %v785, 0.70710677
      %v866 = vmul.f32 %v790, 0.70710677
      %v867 = vmul.f32 %v793, 0.70710677
      %v868 = verf.f32.pop %v832
      %v869 = verf.f32.pop %v833
      %v870 = verf.f32.pop %v834
      %v871 = verf.f32.pop %v835
      %v872 = verf.f32.pop %v836
      %v873 = verf.f32.pop %v837
      %v874 = verf.f32.pop %v838
      %v875 = verf.f32.pop %v839
      %v876 = verf.f32.pop %v840
      %v877 = verf.f32.pop %v841
      %v878 = verf.f32.pop %v842
      %v879 = verf.f32.pop %v843
      %v880 = verf.f32.pop %v844
      %v881 = verf.f32.pop %v845
      %v882 = verf.f32.pop %v846
      %v883 = verf.f32.pop %v847
      %v884 = verf.f32.pop %v848
      %v885 = verf.f32.pop %v849
      %v886 = verf.f32.pop %v850
      %v887 = verf.f32.pop %v851
      %v888 = verf.f32.pop %v852
      %v889 = verf.f32.pop %v853
      %v890 = verf.f32.pop %v854
      %v891 = verf.f32.pop %v855
      %v892 = verf.f32.pop %v856
      %v893 = verf.f32.pop %v857
      %v894 = verf.f32.pop %v858
      %v895 = verf.f32.pop %v859
      %v896 = verf.f32.pop %v860
      %v897 = verf.f32.pop %v861
      %v898 = verf.f32.pop %v862
      %v899 = verf.f32.pop %v863
      %v900 = verf.f32.pop %v864
      %v901 = verf.f32.pop %v865
      %v902 = verf.f32.pop %v866
      %v903 = verf.f32.pop %v867
      %v904 = vadd.f32 %v868, 1.0
      %v905 = vadd.f32 %v869, 1.0
      %v906 = vadd.f32 %v870, 1.0
      %v907 = vadd.f32 %v871, 1.0
      %v908 = vadd.f32 %v872, 1.0
      %v909 = vadd.f32 %v873, 1.0
      %v910 = vadd.f32 %v874, 1.0
      %v911 = vadd.f32 %v875, 1.0
      %v912 = vadd.f32 %v876, 1.0
      %v913 = vadd.f32 %v877, 1.0
      %v914 = vadd.f32 %v878, 1.0
      %v915 = vadd.f32 %v879, 1.0
      %v916 = vadd.f32 %v880, 1.0
      %v917 = vadd.f32 %v881, 1.0
      %v918 = vadd.f32 %v882, 1.0
      %v919 = vadd.f32 %v883, 1.0
      %v920 = vadd.f32 %v884, 1.0
      %v921 = vadd.f32 %v885, 1.0
      %v922 = vadd.f32 %v886, 1.0
      %v923 = vadd.f32 %v887, 1.0
      %v924 = vadd.f32 %v888, 1.0
      %v925 = vadd.f32 %v889, 1.0
      %v926 = vadd.f32 %v890, 1.0
      %v927 = vadd.f32 %v891, 1.0
      %v928 = vadd.f32 %v892, 1.0
      %v929 = vadd.f32 %v893, 1.0
      %v930 = vadd.f32 %v894, 1.0
      %v931 = vadd.f32 %v895, 1.0
      %v932 = vadd.f32 %v896, 1.0
      %v933 = vadd.f32 %v897, 1.0
      %v934 = vadd.f32 %v898, 1.0
      %v935 = vadd.f32 %v899, 1.0
      %v936 = vadd.f32 %v900, 1.0
      %v937 = vadd.f32 %v901, 1.0
      %v938 = vadd.f32 %v902, 1.0
      %v939 = vadd.f32 %v903, 1.0
      %v940 = vmul.f32 %v796, %v904
      %v941 = vmul.f32 %v797, %v905
      %v942 = vmul.f32 %v798, %v906
      %v943 = vmul.f32 %v799, %v907
      %v944 = vmul.f32 %v800, %v908
      %v945 = vmul.f32 %v801, %v909
      %v946 = vmul.f32 %v802, %v910
      %v947 = vmul.f32 %v803, %v911
      %v948 = vmul.f32 %v804, %v912
      %v949 = vmul.f32 %v805, %v913
      %v950 = vmul.f32 %v806, %v914
      %v951 = vmul.f32 %v807, %v915
      %v952 = vmul.f32 %v808, %v916
      %v953 = vmul.f32 %v809, %v917
      %v954 = vmul.f32 %v810, %v918
      %v955 = vmul.f32 %v811, %v919
      %v956 = vmul.f32 %v812, %v920
      %v957 = vmul.f32 %v813, %v921
      %v958 = vmul.f32 %v814, %v922
      %v959 = vmul.f32 %v815, %v923
      %v960 = vmul.f32 %v816, %v924
      %v961 = vmul.f32 %v817, %v925
      %v962 = vmul.f32 %v818, %v926
      %v963 = vmul.f32 %v819, %v927
      %v964 = vmul.f32 %v820, %v928
      %v965 = vmul.f32 %v821, %v929
      %v966 = vmul.f32 %v822, %v930
      %v967 = vmul.f32 %v823, %v931
      %v968 = vmul.f32 %v824, %v932
      %v969 = vmul.f32 %v825, %v933
      %v970 = vmul.f32 %v826, %v934
      %v971 = vmul.f32 %v827, %v935
      %v972 = vmul.f32 %v828, %v936
      %v973 = vmul.f32 %v829, %v937
      %v974 = vmul.f32 %v830, %v938
      %v975 = vmul.f32 %v831, %v939
      %vm1012 = vcmask 1040384
      %v1013 = vrot.slane %v940, 7
      %v1014 = vrot.slane %v941, 7
      %v1015 = vsel %vm1012, %v1013, %v1014
      %v1016 = vrot.slane %v942, 7
      %v1017 = vrot.slane %v943, 7
      %v1018 = vsel %vm1012, %v1016, %v1017
      %v1019 = vrot.slane %v944, 7
      %v1020 = vrot.slane %v945, 7
      %v1021 = vsel %vm1012, %v1019, %v1020
      %v1022 = vrot.slane %v946, 7
      %v1023 = vrot.slane %v947, 7
      %v1024 = vsel %vm1012, %v1022, %v1023
      %v1025 = vrot.slane %v948, 7
      %v1026 = vrot.slane %v949, 7
      %v1027 = vsel %vm1012, %v1025, %v1026
      %v1028 = vrot.slane %v950, 7
      %v1029 = vrot.slane %v951, 7
      %v1030 = vsel %vm1012, %v1028, %v1029
      %v1031 = vrot.slane %v952, 7
      %v1032 = vrot.slane %v953, 7
      %v1033 = vsel %vm1012, %v1031, %v1032
      %v1034 = vrot.slane %v954, 7
      %v1035 = vrot.slane %v955, 7
      %v1036 = vsel %vm1012, %v1034, %v1035
      %v1037 = vrot.slane %v956, 7
      %v1038 = vrot.slane %v957, 7
      %v1039 = vsel %vm1012, %v1037, %v1038
      %v1040 = vrot.slane %v958, 7
      %v1041 = vrot.slane %v959, 7
      %v1042 = vsel %vm1012, %v1040, %v1041
      %v1043 = vrot.slane %v960, 7
      %v1044 = vrot.slane %v961, 7
      %v1045 = vsel %vm1012, %v1043, %v1044
      %v1046 = vrot.slane %v962, 7
      %v1047 = vrot.slane %v963, 7
      %v1048 = vsel %vm1012, %v1046, %v1047
      %v1049 = vrot.slane %v964, 7
      %v1050 = vrot.slane %v965, 7
      %v1051 = vsel %vm1012, %v1049, %v1050
      %v1052 = vrot.slane %v966, 7
      %v1053 = vrot.slane %v967, 7
      %v1054 = vsel %vm1012, %v1052, %v1053
      %v1055 = vrot.slane %v968, 7
      %v1056 = vrot.slane %v969, 7
      %v1057 = vsel %vm1012, %v1055, %v1056
      %v1058 = vrot.slane %v970, 7
      %v1059 = vrot.slane %v971, 7
      %v1060 = vsel %vm1012, %v1058, %v1059
      %v1061 = vrot.slane %v972, 7
      %v1062 = vrot.slane %v973, 7
      %v1063 = vsel %vm1012, %v1061, %v1062
      %v1064 = vrot.slane %v974, 7
      %v1065 = vrot.slane %v975, 7
      %v1066 = vsel %vm1012, %v1064, %v1065
      %v1103 = vsel %vm1012, 0.0, %v1013
      %v1104 = vsel %vm1012, 0.0, %v1016
      %v1105 = vsel %vm1012, 0.0, %v1019
      %v1106 = vsel %vm1012, 0.0, %v1022
      %v1107 = vsel %vm1012, 0.0, %v1025
      %v1108 = vsel %vm1012, 0.0, %v1028
      %v1109 = vsel %vm1012, 0.0, %v1031
      %v1110 = vsel %vm1012, 0.0, %v1034
      %v1111 = vsel %vm1012, 0.0, %v1037
      %v1112 = vsel %vm1012, 0.0, %v1040
      %v1113 = vsel %vm1012, 0.0, %v1043
      %v1114 = vsel %vm1012, 0.0, %v1046
      %v1115 = vsel %vm1012, 0.0, %v1049
      %v1116 = vsel %vm1012, 0.0, %v1052
      %v1117 = vsel %vm1012, 0.0, %v1055
      %v1118 = vsel %vm1012, 0.0, %v1058
      %v1119 = vsel %vm1012, 0.0, %v1061
      %v1120 = vsel %vm1012, 0.0, %v1064
      %vm1121 = vcmask 1046528
      %v1122 = vrot.slane %v940, 1
      %v1123 = vrot.slane %v941, 1
      %v1124 = vsel %vm1121, %v1122, %v1123
      %v1125 = vrot.slane %v942, 1
      %v1126 = vrot.slane %v943, 1
      %v1127 = vsel %vm1121, %v1125, %v1126
      %v1128 = vrot.slane %v944, 1
      %v1129 = vrot.slane %v945, 1
      %v1130 = vsel %vm1121, %v1128, %v1129
      %v1131 = vrot.slane %v946, 1
      %v1132 = vrot.slane %v947, 1
      %v1133 = vsel %vm1121, %v1131, %v1132
      %v1134 = vrot.slane %v948, 1
      %v1135 = vrot.slane %v949, 1
      %v1136 = vsel %vm1121, %v1134, %v1135
      %v1137 = vrot.slane %v950, 1
      %v1138 = vrot.slane %v951, 1
      %v1139 = vsel %vm1121, %v1137, %v1138
      %v1140 = vrot.slane %v952, 1
      %v1141 = vrot.slane %v953, 1
      %v1142 = vsel %vm1121, %v1140, %v1141
      %v1143 = vrot.slane %v954, 1
      %v1144 = vrot.slane %v955, 1
      %v1145 = vsel %vm1121, %v1143, %v1144
      %v1146 = vrot.slane %v956, 1
      %v1147 = vrot.slane %v957, 1
      %v1148 = vsel %vm1121, %v1146, %v1147
      %v1149 = vrot.slane %v958, 1
      %v1150 = vrot.slane %v959, 1
      %v1151 = vsel %vm1121, %v1149, %v1150
      %v1152 = vrot.slane %v960, 1
      %v1153 = vrot.slane %v961, 1
      %v1154 = vsel %vm1121, %v1152, %v1153
      %v1155 = vrot.slane %v962, 1
      %v1156 = vrot.slane %v963, 1
      %v1157 = vsel %vm1121, %v1155, %v1156
      %v1158 = vrot.slane %v964, 1
      %v1159 = vrot.slane %v965, 1
      %v1160 = vsel %vm1121, %v1158, %v1159
      %v1161 = vrot.slane %v966, 1
      %v1162 = vrot.slane %v967, 1
      %v1163 = vsel %vm1121, %v1161, %v1162
      %v1164 = vrot.slane %v968, 1
      %v1165 = vrot.slane %v969, 1
      %v1166 = vsel %vm1121, %v1164, %v1165
      %v1167 = vrot.slane %v970, 1
      %v1168 = vrot.slane %v971, 1
      %v1169 = vsel %vm1121, %v1167, %v1168
      %v1170 = vrot.slane %v972, 1
      %v1171 = vrot.slane %v973, 1
      %v1172 = vsel %vm1121, %v1170, %v1171
      %v1173 = vrot.slane %v974, 1
      %v1174 = vrot.slane %v975, 1
      %v1175 = vsel %vm1121, %v1173, %v1174
      %v1212 = vsel %vm1121, %v1123, 0.0
      %v1213 = vsel %vm1121, %v1126, 0.0
      %v1214 = vsel %vm1121, %v1129, 0.0
      %v1215 = vsel %vm1121, %v1132, 0.0
      %v1216 = vsel %vm1121, %v1135, 0.0
      %v1217 = vsel %vm1121, %v1138, 0.0
      %v1218 = vsel %vm1121, %v1141, 0.0
      %v1219 = vsel %vm1121, %v1144, 0.0
      %v1220 = vsel %vm1121, %v1147, 0.0
      %v1221 = vsel %vm1121, %v1150, 0.0
      %v1222 = vsel %vm1121, %v1153, 0.0
      %v1223 = vsel %vm1121, %v1156, 0.0
      %v1224 = vsel %vm1121, %v1159, 0.0
      %v1225 = vsel %vm1121, %v1162, 0.0
      %v1226 = vsel %vm1121, %v1165, 0.0
      %v1227 = vsel %vm1121, %v1168, 0.0
      %v1228 = vsel %vm1121, %v1171, 0.0
      %v1229 = vsel %vm1121, %v1174, 0.0
      %v1230 = vld [vmem:[%s4] sm:$0x7]
      %v1231 = vld [vmem:[%s4 + $0x4] sm:$0x7]
      %v1232 = vld [vmem:[%s4 + $0x8] sm:$0x7]
      %v1233 = vlaneseq
      %v1234 = vshrl.u32 %v1233, 7
      %v1235 = vsub.s32 0, %v1234
      %v1236 = vrot.slane %v1230, %v1235
      %v1237 = vmul.f32 %v1103, %v1236
      %v1238 = vmul.f32 %v1015, %v1236
      %v1239 = vmul.f32 %v1104, %v1236
      %v1240 = vmul.f32 %v1018, %v1236
      %v1241 = vmul.f32 %v1105, %v1236
      %v1242 = vmul.f32 %v1021, %v1236
      %v1243 = vmul.f32 %v1106, %v1236
      %v1244 = vmul.f32 %v1024, %v1236
      %v1245 = vmul.f32 %v1107, %v1236
      %v1246 = vmul.f32 %v1027, %v1236
      %v1247 = vmul.f32 %v1108, %v1236
      %v1248 = vmul.f32 %v1030, %v1236
      %v1249 = vmul.f32 %v1109, %v1236
      %v1250 = vmul.f32 %v1033, %v1236
      %v1251 = vmul.f32 %v1110, %v1236
      %v1252 = vmul.f32 %v1036, %v1236
      %v1253 = vmul.f32 %v1111, %v1236
      %v1254 = vmul.f32 %v1039, %v1236
      %v1255 = vmul.f32 %v1112, %v1236
      %v1256 = vmul.f32 %v1042, %v1236
      %v1257 = vmul.f32 %v1113, %v1236
      %v1258 = vmul.f32 %v1045, %v1236
      %v1259 = vmul.f32 %v1114, %v1236
      %v1260 = vmul.f32 %v1048, %v1236
      %v1261 = vmul.f32 %v1115, %v1236
      %v1262 = vmul.f32 %v1051, %v1236
      %v1263 = vmul.f32 %v1116, %v1236
      %v1264 = vmul.f32 %v1054, %v1236
      %v1265 = vmul.f32 %v1117, %v1236
      %v1266 = vmul.f32 %v1057, %v1236
      %v1267 = vmul.f32 %v1118, %v1236
      %v1268 = vmul.f32 %v1060, %v1236
      %v1269 = vadd.f32 %v1237, 0.0
      %v1270 = vadd.f32 %v1238, 0.0
      %v1271 = vadd.f32 %v1239, 0.0
      %v1272 = vadd.f32 %v1240, 0.0
      %v1273 = vadd.f32 %v1241, 0.0
      %v1274 = vadd.f32 %v1242, 0.0
      %v1275 = vadd.f32 %v1243, 0.0
      %v1276 = vadd.f32 %v1244, 0.0
      %v1277 = vadd.f32 %v1245, 0.0
      %v1278 = vadd.f32 %v1246, 0.0
      %v1279 = vadd.f32 %v1247, 0.0
      %v1280 = vadd.f32 %v1248, 0.0
      %v1281 = vadd.f32 %v1249, 0.0
      %v1282 = vadd.f32 %v1250, 0.0
      %v1283 = vadd.f32 %v1251, 0.0
      %v1284 = vadd.f32 %v1252, 0.0
      %v1285 = vadd.f32 %v1253, 0.0
      %v1286 = vadd.f32 %v1254, 0.0
      %v1287 = vadd.f32 %v1255, 0.0
      %v1288 = vadd.f32 %v1256, 0.0
      %v1289 = vadd.f32 %v1257, 0.0
      %v1290 = vadd.f32 %v1258, 0.0
      %v1291 = vadd.f32 %v1259, 0.0
      %v1292 = vadd.f32 %v1260, 0.0
      %v1293 = vadd.f32 %v1261, 0.0
      %v1294 = vadd.f32 %v1262, 0.0
      %v1295 = vadd.f32 %v1263, 0.0
      %v1296 = vadd.f32 %v1264, 0.0
      %v1297 = vadd.f32 %v1265, 0.0
      %v1298 = vadd.f32 %v1266, 0.0
      %v1299 = vadd.f32 %v1267, 0.0
      %v1300 = vadd.f32 %v1268, 0.0
      %v1301 = vlaneseq
      %v1302 = vshrl.u32 %v1301, 7
      %v1303 = vsub.s32 1, %v1302
      %v1304 = vrot.slane %v1230, %v1303
      %v1305 = vmul.f32 %v940, %v1304
      %v1306 = vmul.f32 %v941, %v1304
      %v1307 = vmul.f32 %v942, %v1304
      %v1308 = vmul.f32 %v943, %v1304
      %v1309 = vmul.f32 %v944, %v1304
      %v1310 = vmul.f32 %v945, %v1304
      %v1311 = vmul.f32 %v946, %v1304
      %v1312 = vmul.f32 %v947, %v1304
      %v1313 = vmul.f32 %v948, %v1304
      %v1314 = vmul.f32 %v949, %v1304
      %v1315 = vmul.f32 %v950, %v1304
      %v1316 = vmul.f32 %v951, %v1304
      %v1317 = vmul.f32 %v952, %v1304
      %v1318 = vmul.f32 %v953, %v1304
      %v1319 = vmul.f32 %v954, %v1304
      %v1320 = vmul.f32 %v955, %v1304
      %v1321 = vmul.f32 %v956, %v1304
      %v1322 = vmul.f32 %v957, %v1304
      %v1323 = vmul.f32 %v958, %v1304
      %v1324 = vmul.f32 %v959, %v1304
      %v1325 = vmul.f32 %v960, %v1304
      %v1326 = vmul.f32 %v961, %v1304
      %v1327 = vmul.f32 %v962, %v1304
      %v1328 = vmul.f32 %v963, %v1304
      %v1329 = vmul.f32 %v964, %v1304
      %v1330 = vmul.f32 %v965, %v1304
      %v1331 = vmul.f32 %v966, %v1304
      %v1332 = vmul.f32 %v967, %v1304
      %v1333 = vmul.f32 %v968, %v1304
      %v1334 = vmul.f32 %v969, %v1304
      %v1335 = vmul.f32 %v970, %v1304
      %v1336 = vmul.f32 %v971, %v1304
      %v1337 = vadd.f32 %v1269, %v1305
      %v1338 = vadd.f32 %v1270, %v1306
      %v1339 = vadd.f32 %v1271, %v1307
      %v1340 = vadd.f32 %v1272, %v1308
      %v1341 = vadd.f32 %v1273, %v1309
      %v1342 = vadd.f32 %v1274, %v1310
      %v1343 = vadd.f32 %v1275, %v1311
      %v1344 = vadd.f32 %v1276, %v1312
      %v1345 = vadd.f32 %v1277, %v1313
      %v1346 = vadd.f32 %v1278, %v1314
      %v1347 = vadd.f32 %v1279, %v1315
      %v1348 = vadd.f32 %v1280, %v1316
      %v1349 = vadd.f32 %v1281, %v1317
      %v1350 = vadd.f32 %v1282, %v1318
      %v1351 = vadd.f32 %v1283, %v1319
      %v1352 = vadd.f32 %v1284, %v1320
      %v1353 = vadd.f32 %v1285, %v1321
      %v1354 = vadd.f32 %v1286, %v1322
      %v1355 = vadd.f32 %v1287, %v1323
      %v1356 = vadd.f32 %v1288, %v1324
      %v1357 = vadd.f32 %v1289, %v1325
      %v1358 = vadd.f32 %v1290, %v1326
      %v1359 = vadd.f32 %v1291, %v1327
      %v1360 = vadd.f32 %v1292, %v1328
      %v1361 = vadd.f32 %v1293, %v1329
      %v1362 = vadd.f32 %v1294, %v1330
      %v1363 = vadd.f32 %v1295, %v1331
      %v1364 = vadd.f32 %v1296, %v1332
      %v1365 = vadd.f32 %v1297, %v1333
      %v1366 = vadd.f32 %v1298, %v1334
      %v1367 = vadd.f32 %v1299, %v1335
      %v1368 = vadd.f32 %v1300, %v1336
      %v1369 = vlaneseq
      %v1370 = vshrl.u32 %v1369, 7
      %v1371 = vsub.s32 2, %v1370
      %v1372 = vrot.slane %v1230, %v1371
      %v1373 = vmul.f32 %v1124, %v1372
      %v1374 = vmul.f32 %v1212, %v1372
      %v1375 = vmul.f32 %v1127, %v1372
      %v1376 = vmul.f32 %v1213, %v1372
      %v1377 = vmul.f32 %v1130, %v1372
      %v1378 = vmul.f32 %v1214, %v1372
      %v1379 = vmul.f32 %v1133, %v1372
      %v1380 = vmul.f32 %v1215, %v1372
      %v1381 = vmul.f32 %v1136, %v1372
      %v1382 = vmul.f32 %v1216, %v1372
      %v1383 = vmul.f32 %v1139, %v1372
      %v1384 = vmul.f32 %v1217, %v1372
      %v1385 = vmul.f32 %v1142, %v1372
      %v1386 = vmul.f32 %v1218, %v1372
      %v1387 = vmul.f32 %v1145, %v1372
      %v1388 = vmul.f32 %v1219, %v1372
      %v1389 = vmul.f32 %v1148, %v1372
      %v1390 = vmul.f32 %v1220, %v1372
      %v1391 = vmul.f32 %v1151, %v1372
      %v1392 = vmul.f32 %v1221, %v1372
      %v1393 = vmul.f32 %v1154, %v1372
      %v1394 = vmul.f32 %v1222, %v1372
      %v1395 = vmul.f32 %v1157, %v1372
      %v1396 = vmul.f32 %v1223, %v1372
      %v1397 = vmul.f32 %v1160, %v1372
      %v1398 = vmul.f32 %v1224, %v1372
      %v1399 = vmul.f32 %v1163, %v1372
      %v1400 = vmul.f32 %v1225, %v1372
      %v1401 = vmul.f32 %v1166, %v1372
      %v1402 = vmul.f32 %v1226, %v1372
      %v1403 = vmul.f32 %v1169, %v1372
      %v1404 = vmul.f32 %v1227, %v1372
      %v1405 = vadd.f32 %v1337, %v1373
      %v1406 = vadd.f32 %v1338, %v1374
      %v1407 = vadd.f32 %v1339, %v1375
      %v1408 = vadd.f32 %v1340, %v1376
      %v1409 = vadd.f32 %v1341, %v1377
      %v1410 = vadd.f32 %v1342, %v1378
      %v1411 = vadd.f32 %v1343, %v1379
      %v1412 = vadd.f32 %v1344, %v1380
      %v1413 = vadd.f32 %v1345, %v1381
      %v1414 = vadd.f32 %v1346, %v1382
      %v1415 = vadd.f32 %v1347, %v1383
      %v1416 = vadd.f32 %v1348, %v1384
      %v1417 = vadd.f32 %v1349, %v1385
      %v1418 = vadd.f32 %v1350, %v1386
      %v1419 = vadd.f32 %v1351, %v1387
      %v1420 = vadd.f32 %v1352, %v1388
      %v1421 = vadd.f32 %v1353, %v1389
      %v1422 = vadd.f32 %v1354, %v1390
      %v1423 = vadd.f32 %v1355, %v1391
      %v1424 = vadd.f32 %v1356, %v1392
      %v1425 = vadd.f32 %v1357, %v1393
      %v1426 = vadd.f32 %v1358, %v1394
      %v1427 = vadd.f32 %v1359, %v1395
      %v1428 = vadd.f32 %v1360, %v1396
      %v1429 = vadd.f32 %v1361, %v1397
      %v1430 = vadd.f32 %v1362, %v1398
      %v1431 = vadd.f32 %v1363, %v1399
      %v1432 = vadd.f32 %v1364, %v1400
      %v1433 = vadd.f32 %v1365, %v1401
      %v1434 = vadd.f32 %v1366, %v1402
      %v1435 = vadd.f32 %v1367, %v1403
      %v1436 = vadd.f32 %v1368, %v1404
      %v1437 = vlaneseq
      %v1438 = vshrl.u32 %v1437, 7
      %v1439 = vsub.s32 0, %v1438
      %v1440 = vrot.slane %v1231, %v1439
      %v1441 = vmul.f32 %v1104, %v1440
      %v1442 = vmul.f32 %v1018, %v1440
      %v1443 = vmul.f32 %v1105, %v1440
      %v1444 = vmul.f32 %v1021, %v1440
      %v1445 = vmul.f32 %v1106, %v1440
      %v1446 = vmul.f32 %v1024, %v1440
      %v1447 = vmul.f32 %v1107, %v1440
      %v1448 = vmul.f32 %v1027, %v1440
      %v1449 = vmul.f32 %v1108, %v1440
      %v1450 = vmul.f32 %v1030, %v1440
      %v1451 = vmul.f32 %v1109, %v1440
      %v1452 = vmul.f32 %v1033, %v1440
      %v1453 = vmul.f32 %v1110, %v1440
      %v1454 = vmul.f32 %v1036, %v1440
      %v1455 = vmul.f32 %v1111, %v1440
      %v1456 = vmul.f32 %v1039, %v1440
      %v1457 = vmul.f32 %v1112, %v1440
      %v1458 = vmul.f32 %v1042, %v1440
      %v1459 = vmul.f32 %v1113, %v1440
      %v1460 = vmul.f32 %v1045, %v1440
      %v1461 = vmul.f32 %v1114, %v1440
      %v1462 = vmul.f32 %v1048, %v1440
      %v1463 = vmul.f32 %v1115, %v1440
      %v1464 = vmul.f32 %v1051, %v1440
      %v1465 = vmul.f32 %v1116, %v1440
      %v1466 = vmul.f32 %v1054, %v1440
      %v1467 = vmul.f32 %v1117, %v1440
      %v1468 = vmul.f32 %v1057, %v1440
      %v1469 = vmul.f32 %v1118, %v1440
      %v1470 = vmul.f32 %v1060, %v1440
      %v1471 = vmul.f32 %v1119, %v1440
      %v1472 = vmul.f32 %v1063, %v1440
      %v1473 = vadd.f32 %v1405, %v1441
      %v1474 = vadd.f32 %v1406, %v1442
      %v1475 = vadd.f32 %v1407, %v1443
      %v1476 = vadd.f32 %v1408, %v1444
      %v1477 = vadd.f32 %v1409, %v1445
      %v1478 = vadd.f32 %v1410, %v1446
      %v1479 = vadd.f32 %v1411, %v1447
      %v1480 = vadd.f32 %v1412, %v1448
      %v1481 = vadd.f32 %v1413, %v1449
      %v1482 = vadd.f32 %v1414, %v1450
      %v1483 = vadd.f32 %v1415, %v1451
      %v1484 = vadd.f32 %v1416, %v1452
      %v1485 = vadd.f32 %v1417, %v1453
      %v1486 = vadd.f32 %v1418, %v1454
      %v1487 = vadd.f32 %v1419, %v1455
      %v1488 = vadd.f32 %v1420, %v1456
      %v1489 = vadd.f32 %v1421, %v1457
      %v1490 = vadd.f32 %v1422, %v1458
      %v1491 = vadd.f32 %v1423, %v1459
      %v1492 = vadd.f32 %v1424, %v1460
      %v1493 = vadd.f32 %v1425, %v1461
      %v1494 = vadd.f32 %v1426, %v1462
      %v1495 = vadd.f32 %v1427, %v1463
      %v1496 = vadd.f32 %v1428, %v1464
      %v1497 = vadd.f32 %v1429, %v1465
      %v1498 = vadd.f32 %v1430, %v1466
      %v1499 = vadd.f32 %v1431, %v1467
      %v1500 = vadd.f32 %v1432, %v1468
      %v1501 = vadd.f32 %v1433, %v1469
      %v1502 = vadd.f32 %v1434, %v1470
      %v1503 = vadd.f32 %v1435, %v1471
      %v1504 = vadd.f32 %v1436, %v1472
      %v1505 = vlaneseq
      %v1506 = vshrl.u32 %v1505, 7
      %v1507 = vsub.s32 1, %v1506
      %v1508 = vrot.slane %v1231, %v1507
      %v1509 = vmul.f32 %v942, %v1508
      %v1510 = vmul.f32 %v943, %v1508
      %v1511 = vmul.f32 %v944, %v1508
      %v1512 = vmul.f32 %v945, %v1508
      %v1513 = vmul.f32 %v946, %v1508
      %v1514 = vmul.f32 %v947, %v1508
      %v1515 = vmul.f32 %v948, %v1508
      %v1516 = vmul.f32 %v949, %v1508
      %v1517 = vmul.f32 %v950, %v1508
      %v1518 = vmul.f32 %v951, %v1508
      %v1519 = vmul.f32 %v952, %v1508
      %v1520 = vmul.f32 %v953, %v1508
      %v1521 = vmul.f32 %v954, %v1508
      %v1522 = vmul.f32 %v955, %v1508
      %v1523 = vmul.f32 %v956, %v1508
      %v1524 = vmul.f32 %v957, %v1508
      %v1525 = vmul.f32 %v958, %v1508
      %v1526 = vmul.f32 %v959, %v1508
      %v1527 = vmul.f32 %v960, %v1508
      %v1528 = vmul.f32 %v961, %v1508
      %v1529 = vmul.f32 %v962, %v1508
      %v1530 = vmul.f32 %v963, %v1508
      %v1531 = vmul.f32 %v964, %v1508
      %v1532 = vmul.f32 %v965, %v1508
      %v1533 = vmul.f32 %v966, %v1508
      %v1534 = vmul.f32 %v967, %v1508
      %v1535 = vmul.f32 %v968, %v1508
      %v1536 = vmul.f32 %v969, %v1508
      %v1537 = vmul.f32 %v970, %v1508
      %v1538 = vmul.f32 %v971, %v1508
      %v1539 = vmul.f32 %v972, %v1508
      %v1540 = vmul.f32 %v973, %v1508
      %v1541 = vadd.f32 %v1473, %v1509
      %v1542 = vadd.f32 %v1474, %v1510
      %v1543 = vadd.f32 %v1475, %v1511
      %v1544 = vadd.f32 %v1476, %v1512
      %v1545 = vadd.f32 %v1477, %v1513
      %v1546 = vadd.f32 %v1478, %v1514
      %v1547 = vadd.f32 %v1479, %v1515
      %v1548 = vadd.f32 %v1480, %v1516
      %v1549 = vadd.f32 %v1481, %v1517
      %v1550 = vadd.f32 %v1482, %v1518
      %v1551 = vadd.f32 %v1483, %v1519
      %v1552 = vadd.f32 %v1484, %v1520
      %v1553 = vadd.f32 %v1485, %v1521
      %v1554 = vadd.f32 %v1486, %v1522
      %v1555 = vadd.f32 %v1487, %v1523
      %v1556 = vadd.f32 %v1488, %v1524
      %v1557 = vadd.f32 %v1489, %v1525
      %v1558 = vadd.f32 %v1490, %v1526
      %v1559 = vadd.f32 %v1491, %v1527
      %v1560 = vadd.f32 %v1492, %v1528
      %v1561 = vadd.f32 %v1493, %v1529
      %v1562 = vadd.f32 %v1494, %v1530
      %v1563 = vadd.f32 %v1495, %v1531
      %v1564 = vadd.f32 %v1496, %v1532
      %v1565 = vadd.f32 %v1497, %v1533
      %v1566 = vadd.f32 %v1498, %v1534
      %v1567 = vadd.f32 %v1499, %v1535
      %v1568 = vadd.f32 %v1500, %v1536
      %v1569 = vadd.f32 %v1501, %v1537
      %v1570 = vadd.f32 %v1502, %v1538
      %v1571 = vadd.f32 %v1503, %v1539
      %v1572 = vadd.f32 %v1504, %v1540
      %v1573 = vlaneseq
      %v1574 = vshrl.u32 %v1573, 7
      %v1575 = vsub.s32 2, %v1574
      %v1576 = vrot.slane %v1231, %v1575
      %v1577 = vmul.f32 %v1127, %v1576
      %v1578 = vmul.f32 %v1213, %v1576
      %v1579 = vmul.f32 %v1130, %v1576
      %v1580 = vmul.f32 %v1214, %v1576
      %v1581 = vmul.f32 %v1133, %v1576
      %v1582 = vmul.f32 %v1215, %v1576
      %v1583 = vmul.f32 %v1136, %v1576
      %v1584 = vmul.f32 %v1216, %v1576
      %v1585 = vmul.f32 %v1139, %v1576
      %v1586 = vmul.f32 %v1217, %v1576
      %v1587 = vmul.f32 %v1142, %v1576
      %v1588 = vmul.f32 %v1218, %v1576
      %v1589 = vmul.f32 %v1145, %v1576
      %v1590 = vmul.f32 %v1219, %v1576
      %v1591 = vmul.f32 %v1148, %v1576
      %v1592 = vmul.f32 %v1220, %v1576
      %v1593 = vmul.f32 %v1151, %v1576
      %v1594 = vmul.f32 %v1221, %v1576
      %v1595 = vmul.f32 %v1154, %v1576
      %v1596 = vmul.f32 %v1222, %v1576
      %v1597 = vmul.f32 %v1157, %v1576
      %v1598 = vmul.f32 %v1223, %v1576
      %v1599 = vmul.f32 %v1160, %v1576
      %v1600 = vmul.f32 %v1224, %v1576
      %v1601 = vmul.f32 %v1163, %v1576
      %v1602 = vmul.f32 %v1225, %v1576
      %v1603 = vmul.f32 %v1166, %v1576
      %v1604 = vmul.f32 %v1226, %v1576
      %v1605 = vmul.f32 %v1169, %v1576
      %v1606 = vmul.f32 %v1227, %v1576
      %v1607 = vmul.f32 %v1172, %v1576
      %v1608 = vmul.f32 %v1228, %v1576
      %v1609 = vadd.f32 %v1541, %v1577
      %v1610 = vadd.f32 %v1542, %v1578
      %v1611 = vadd.f32 %v1543, %v1579
      %v1612 = vadd.f32 %v1544, %v1580
      %v1613 = vadd.f32 %v1545, %v1581
      %v1614 = vadd.f32 %v1546, %v1582
      %v1615 = vadd.f32 %v1547, %v1583
      %v1616 = vadd.f32 %v1548, %v1584
      %v1617 = vadd.f32 %v1549, %v1585
      %v1618 = vadd.f32 %v1550, %v1586
      %v1619 = vadd.f32 %v1551, %v1587
      %v1620 = vadd.f32 %v1552, %v1588
      %v1621 = vadd.f32 %v1553, %v1589
      %v1622 = vadd.f32 %v1554, %v1590
      %v1623 = vadd.f32 %v1555, %v1591
      %v1624 = vadd.f32 %v1556, %v1592
      %v1625 = vadd.f32 %v1557, %v1593
      %v1626 = vadd.f32 %v1558, %v1594
      %v1627 = vadd.f32 %v1559, %v1595
      %v1628 = vadd.f32 %v1560, %v1596
      %v1629 = vadd.f32 %v1561, %v1597
      %v1630 = vadd.f32 %v1562, %v1598
      %v1631 = vadd.f32 %v1563, %v1599
      %v1632 = vadd.f32 %v1564, %v1600
      %v1633 = vadd.f32 %v1565, %v1601
      %v1634 = vadd.f32 %v1566, %v1602
      %v1635 = vadd.f32 %v1567, %v1603
      %v1636 = vadd.f32 %v1568, %v1604
      %v1637 = vadd.f32 %v1569, %v1605
      %v1638 = vadd.f32 %v1570, %v1606
      %v1639 = vadd.f32 %v1571, %v1607
      %v1640 = vadd.f32 %v1572, %v1608
      %v1641 = vlaneseq
      %v1642 = vshrl.u32 %v1641, 7
      %v1643 = vsub.s32 0, %v1642
      %v1644 = vrot.slane %v1232, %v1643
      %v1645 = vmul.f32 %v1105, %v1644
      %v1646 = vmul.f32 %v1021, %v1644
      %v1647 = vmul.f32 %v1106, %v1644
      %v1648 = vmul.f32 %v1024, %v1644
      %v1649 = vmul.f32 %v1107, %v1644
      %v1650 = vmul.f32 %v1027, %v1644
      %v1651 = vmul.f32 %v1108, %v1644
      %v1652 = vmul.f32 %v1030, %v1644
      %v1653 = vmul.f32 %v1109, %v1644
      %v1654 = vmul.f32 %v1033, %v1644
      %v1655 = vmul.f32 %v1110, %v1644
      %v1656 = vmul.f32 %v1036, %v1644
      %v1657 = vmul.f32 %v1111, %v1644
      %v1658 = vmul.f32 %v1039, %v1644
      %v1659 = vmul.f32 %v1112, %v1644
      %v1660 = vmul.f32 %v1042, %v1644
      %v1661 = vmul.f32 %v1113, %v1644
      %v1662 = vmul.f32 %v1045, %v1644
      %v1663 = vmul.f32 %v1114, %v1644
      %v1664 = vmul.f32 %v1048, %v1644
      %v1665 = vmul.f32 %v1115, %v1644
      %v1666 = vmul.f32 %v1051, %v1644
      %v1667 = vmul.f32 %v1116, %v1644
      %v1668 = vmul.f32 %v1054, %v1644
      %v1669 = vmul.f32 %v1117, %v1644
      %v1670 = vmul.f32 %v1057, %v1644
      %v1671 = vmul.f32 %v1118, %v1644
      %v1672 = vmul.f32 %v1060, %v1644
      %v1673 = vmul.f32 %v1119, %v1644
      %v1674 = vmul.f32 %v1063, %v1644
      %v1675 = vmul.f32 %v1120, %v1644
      %v1676 = vmul.f32 %v1066, %v1644
      %v1677 = vadd.f32 %v1609, %v1645
      %v1678 = vadd.f32 %v1610, %v1646
      %v1679 = vadd.f32 %v1611, %v1647
      %v1680 = vadd.f32 %v1612, %v1648
      %v1681 = vadd.f32 %v1613, %v1649
      %v1682 = vadd.f32 %v1614, %v1650
      %v1683 = vadd.f32 %v1615, %v1651
      %v1684 = vadd.f32 %v1616, %v1652
      %v1685 = vadd.f32 %v1617, %v1653
      %v1686 = vadd.f32 %v1618, %v1654
      %v1687 = vadd.f32 %v1619, %v1655
      %v1688 = vadd.f32 %v1620, %v1656
      %v1689 = vadd.f32 %v1621, %v1657
      %v1690 = vadd.f32 %v1622, %v1658
      %v1691 = vadd.f32 %v1623, %v1659
      %v1692 = vadd.f32 %v1624, %v1660
      %v1693 = vadd.f32 %v1625, %v1661
      %v1694 = vadd.f32 %v1626, %v1662
      %v1695 = vadd.f32 %v1627, %v1663
      %v1696 = vadd.f32 %v1628, %v1664
      %v1697 = vadd.f32 %v1629, %v1665
      %v1698 = vadd.f32 %v1630, %v1666
      %v1699 = vadd.f32 %v1631, %v1667
      %v1700 = vadd.f32 %v1632, %v1668
      %v1701 = vadd.f32 %v1633, %v1669
      %v1702 = vadd.f32 %v1634, %v1670
      %v1703 = vadd.f32 %v1635, %v1671
      %v1704 = vadd.f32 %v1636, %v1672
      %v1705 = vadd.f32 %v1637, %v1673
      %v1706 = vadd.f32 %v1638, %v1674
      %v1707 = vadd.f32 %v1639, %v1675
      %v1708 = vadd.f32 %v1640, %v1676
      %v1709 = vlaneseq
      %v1710 = vshrl.u32 %v1709, 7
      %v1711 = vsub.s32 1, %v1710
      %v1712 = vrot.slane %v1232, %v1711
      %v1713 = vmul.f32 %v944, %v1712
      %v1714 = vmul.f32 %v945, %v1712
      %v1715 = vmul.f32 %v946, %v1712
      %v1716 = vmul.f32 %v947, %v1712
      %v1717 = vmul.f32 %v948, %v1712
      %v1718 = vmul.f32 %v949, %v1712
      %v1719 = vmul.f32 %v950, %v1712
      %v1720 = vmul.f32 %v951, %v1712
      %v1721 = vmul.f32 %v952, %v1712
      %v1722 = vmul.f32 %v953, %v1712
      %v1723 = vmul.f32 %v954, %v1712
      %v1724 = vmul.f32 %v955, %v1712
      %v1725 = vmul.f32 %v956, %v1712
      %v1726 = vmul.f32 %v957, %v1712
      %v1727 = vmul.f32 %v958, %v1712
      %v1728 = vmul.f32 %v959, %v1712
      %v1729 = vmul.f32 %v960, %v1712
      %v1730 = vmul.f32 %v961, %v1712
      %v1731 = vmul.f32 %v962, %v1712
      %v1732 = vmul.f32 %v963, %v1712
      %v1733 = vmul.f32 %v964, %v1712
      %v1734 = vmul.f32 %v965, %v1712
      %v1735 = vmul.f32 %v966, %v1712
      %v1736 = vmul.f32 %v967, %v1712
      %v1737 = vmul.f32 %v968, %v1712
      %v1738 = vmul.f32 %v969, %v1712
      %v1739 = vmul.f32 %v970, %v1712
      %v1740 = vmul.f32 %v971, %v1712
      %v1741 = vmul.f32 %v972, %v1712
      %v1742 = vmul.f32 %v973, %v1712
      %v1743 = vmul.f32 %v974, %v1712
      %v1744 = vmul.f32 %v975, %v1712
      %v1745 = vadd.f32 %v1677, %v1713
      %v1746 = vadd.f32 %v1678, %v1714
      %v1747 = vadd.f32 %v1679, %v1715
      %v1748 = vadd.f32 %v1680, %v1716
      %v1749 = vadd.f32 %v1681, %v1717
      %v1750 = vadd.f32 %v1682, %v1718
      %v1751 = vadd.f32 %v1683, %v1719
      %v1752 = vadd.f32 %v1684, %v1720
      %v1753 = vadd.f32 %v1685, %v1721
      %v1754 = vadd.f32 %v1686, %v1722
      %v1755 = vadd.f32 %v1687, %v1723
      %v1756 = vadd.f32 %v1688, %v1724
      %v1757 = vadd.f32 %v1689, %v1725
      %v1758 = vadd.f32 %v1690, %v1726
      %v1759 = vadd.f32 %v1691, %v1727
      %v1760 = vadd.f32 %v1692, %v1728
      %v1761 = vadd.f32 %v1693, %v1729
      %v1762 = vadd.f32 %v1694, %v1730
      %v1763 = vadd.f32 %v1695, %v1731
      %v1764 = vadd.f32 %v1696, %v1732
      %v1765 = vadd.f32 %v1697, %v1733
      %v1766 = vadd.f32 %v1698, %v1734
      %v1767 = vadd.f32 %v1699, %v1735
      %v1768 = vadd.f32 %v1700, %v1736
      %v1769 = vadd.f32 %v1701, %v1737
      %v1770 = vadd.f32 %v1702, %v1738
      %v1771 = vadd.f32 %v1703, %v1739
      %v1772 = vadd.f32 %v1704, %v1740
      %v1773 = vadd.f32 %v1705, %v1741
      %v1774 = vadd.f32 %v1706, %v1742
      %v1775 = vadd.f32 %v1707, %v1743
      %v1776 = vadd.f32 %v1708, %v1744
      %v1777 = vlaneseq
      %v1778 = vshrl.u32 %v1777, 7
      %v1779 = vsub.s32 2, %v1778
      %v1780 = vrot.slane %v1232, %v1779
      %v1781 = vmul.f32 %v1130, %v1780
      %v1782 = vmul.f32 %v1214, %v1780
      %v1783 = vmul.f32 %v1133, %v1780
      %v1784 = vmul.f32 %v1215, %v1780
      %v1785 = vmul.f32 %v1136, %v1780
      %v1786 = vmul.f32 %v1216, %v1780
      %v1787 = vmul.f32 %v1139, %v1780
      %v1788 = vmul.f32 %v1217, %v1780
      %v1789 = vmul.f32 %v1142, %v1780
      %v1790 = vmul.f32 %v1218, %v1780
      %v1791 = vmul.f32 %v1145, %v1780
      %v1792 = vmul.f32 %v1219, %v1780
      %v1793 = vmul.f32 %v1148, %v1780
      %v1794 = vmul.f32 %v1220, %v1780
      %v1795 = vmul.f32 %v1151, %v1780
      %v1796 = vmul.f32 %v1221, %v1780
      %v1797 = vmul.f32 %v1154, %v1780
      %v1798 = vmul.f32 %v1222, %v1780
      %v1799 = vmul.f32 %v1157, %v1780
      %v1800 = vmul.f32 %v1223, %v1780
      %v1801 = vmul.f32 %v1160, %v1780
      %v1802 = vmul.f32 %v1224, %v1780
      %v1803 = vmul.f32 %v1163, %v1780
      %v1804 = vmul.f32 %v1225, %v1780
      %v1805 = vmul.f32 %v1166, %v1780
      %v1806 = vmul.f32 %v1226, %v1780
      %v1807 = vmul.f32 %v1169, %v1780
      %v1808 = vmul.f32 %v1227, %v1780
      %v1809 = vmul.f32 %v1172, %v1780
      %v1810 = vmul.f32 %v1228, %v1780
      %v1811 = vmul.f32 %v1175, %v1780
      %v1812 = vmul.f32 %v1229, %v1780
      %v1813 = vadd.f32 %v1745, %v1781
      %v1814 = vadd.f32 %v1746, %v1782
      %v1815 = vadd.f32 %v1747, %v1783
      %v1816 = vadd.f32 %v1748, %v1784
      %v1817 = vadd.f32 %v1749, %v1785
      %v1818 = vadd.f32 %v1750, %v1786
      %v1819 = vadd.f32 %v1751, %v1787
      %v1820 = vadd.f32 %v1752, %v1788
      %v1821 = vadd.f32 %v1753, %v1789
      %v1822 = vadd.f32 %v1754, %v1790
      %v1823 = vadd.f32 %v1755, %v1791
      %v1824 = vadd.f32 %v1756, %v1792
      %v1825 = vadd.f32 %v1757, %v1793
      %v1826 = vadd.f32 %v1758, %v1794
      %v1827 = vadd.f32 %v1759, %v1795
      %v1828 = vadd.f32 %v1760, %v1796
      %v1829 = vadd.f32 %v1761, %v1797
      %v1830 = vadd.f32 %v1762, %v1798
      %v1831 = vadd.f32 %v1763, %v1799
      %v1832 = vadd.f32 %v1764, %v1800
      %v1833 = vadd.f32 %v1765, %v1801
      %v1834 = vadd.f32 %v1766, %v1802
      %v1835 = vadd.f32 %v1767, %v1803
      %v1836 = vadd.f32 %v1768, %v1804
      %v1837 = vadd.f32 %v1769, %v1805
      %v1838 = vadd.f32 %v1770, %v1806
      %v1839 = vadd.f32 %v1771, %v1807
      %v1840 = vadd.f32 %v1772, %v1808
      %v1841 = vadd.f32 %v1773, %v1809
      %v1842 = vadd.f32 %v1774, %v1810
      %v1843 = vadd.f32 %v1775, %v1811
      %v1844 = vadd.f32 %v1776, %v1812
      %v1845 = vmul.f32 %v1813, 0.5
      %v1846 = vmul.f32 %v1814, 0.5
      %v1847 = vmul.f32 %v1815, 0.5
      %v1848 = vmul.f32 %v1816, 0.5
      %v1849 = vmul.f32 %v1817, 0.5
      %v1850 = vmul.f32 %v1818, 0.5
      %v1851 = vmul.f32 %v1819, 0.5
      %v1852 = vmul.f32 %v1820, 0.5
      %v1853 = vmul.f32 %v1821, 0.5
      %v1854 = vmul.f32 %v1822, 0.5
      %v1855 = vmul.f32 %v1823, 0.5
      %v1856 = vmul.f32 %v1824, 0.5
      %v1857 = vmul.f32 %v1825, 0.5
      %v1858 = vmul.f32 %v1826, 0.5
      %v1859 = vmul.f32 %v1827, 0.5
      %v1860 = vmul.f32 %v1828, 0.5
      %v1861 = vmul.f32 %v1829, 0.5
      %v1862 = vmul.f32 %v1830, 0.5
      %v1863 = vmul.f32 %v1831, 0.5
      %v1864 = vmul.f32 %v1832, 0.5
      %v1865 = vmul.f32 %v1833, 0.5
      %v1866 = vmul.f32 %v1834, 0.5
      %v1867 = vmul.f32 %v1835, 0.5
      %v1868 = vmul.f32 %v1836, 0.5
      %v1869 = vmul.f32 %v1837, 0.5
      %v1870 = vmul.f32 %v1838, 0.5
      %v1871 = vmul.f32 %v1839, 0.5
      %v1872 = vmul.f32 %v1840, 0.5
      %v1873 = vmul.f32 %v1841, 0.5
      %v1874 = vmul.f32 %v1842, 0.5
      %v1875 = vmul.f32 %v1843, 0.5
      %v1876 = vmul.f32 %v1844, 0.5
      %v1877 = vmul.f32 %v1813, 0.70710677
      %v1878 = vmul.f32 %v1814, 0.70710677
      %v1879 = vmul.f32 %v1815, 0.70710677
      %v1880 = vmul.f32 %v1816, 0.70710677
      %v1881 = vmul.f32 %v1817, 0.70710677
      %v1882 = vmul.f32 %v1818, 0.70710677
      %v1883 = vmul.f32 %v1819, 0.70710677
      %v1884 = vmul.f32 %v1820, 0.70710677
      %v1885 = vmul.f32 %v1821, 0.70710677
      %v1886 = vmul.f32 %v1822, 0.70710677
      %v1887 = vmul.f32 %v1823, 0.70710677
      %v1888 = vmul.f32 %v1824, 0.70710677
      %v1889 = vmul.f32 %v1825, 0.70710677
      %v1890 = vmul.f32 %v1826, 0.70710677
      %v1891 = vmul.f32 %v1827, 0.70710677
      %v1892 = vmul.f32 %v1828, 0.70710677
      %v1893 = vmul.f32 %v1829, 0.70710677
      %v1894 = vmul.f32 %v1830, 0.70710677
      %v1895 = vmul.f32 %v1831, 0.70710677
      %v1896 = vmul.f32 %v1832, 0.70710677
      %v1897 = vmul.f32 %v1833, 0.70710677
      %v1898 = vmul.f32 %v1834, 0.70710677
      %v1899 = vmul.f32 %v1835, 0.70710677
      %v1900 = vmul.f32 %v1836, 0.70710677
      %v1901 = vmul.f32 %v1837, 0.70710677
      %v1902 = vmul.f32 %v1838, 0.70710677
      %v1903 = vmul.f32 %v1839, 0.70710677
      %v1904 = vmul.f32 %v1840, 0.70710677
      %v1905 = vmul.f32 %v1841, 0.70710677
      %v1906 = vmul.f32 %v1842, 0.70710677
      %v1907 = vmul.f32 %v1843, 0.70710677
      %v1908 = vmul.f32 %v1844, 0.70710677
      %v1909 = verf.f32.pop %v1877
      %v1910 = verf.f32.pop %v1878
      %v1911 = verf.f32.pop %v1879
      %v1912 = verf.f32.pop %v1880
      %v1913 = verf.f32.pop %v1881
      %v1914 = verf.f32.pop %v1882
      %v1915 = verf.f32.pop %v1883
      %v1916 = verf.f32.pop %v1884
      %v1917 = verf.f32.pop %v1885
      %v1918 = verf.f32.pop %v1886
      %v1919 = verf.f32.pop %v1887
      %v1920 = verf.f32.pop %v1888
      %v1921 = verf.f32.pop %v1889
      %v1922 = verf.f32.pop %v1890
      %v1923 = verf.f32.pop %v1891
      %v1924 = verf.f32.pop %v1892
      %v1925 = verf.f32.pop %v1893
      %v1926 = verf.f32.pop %v1894
      %v1927 = verf.f32.pop %v1895
      %v1928 = verf.f32.pop %v1896
      %v1929 = verf.f32.pop %v1897
      %v1930 = verf.f32.pop %v1898
      %v1931 = verf.f32.pop %v1899
      %v1932 = verf.f32.pop %v1900
      %v1933 = verf.f32.pop %v1901
      %v1934 = verf.f32.pop %v1902
      %v1935 = verf.f32.pop %v1903
      %v1936 = verf.f32.pop %v1904
      %v1937 = verf.f32.pop %v1905
      %v1938 = verf.f32.pop %v1906
      %v1939 = verf.f32.pop %v1907
      %v1940 = verf.f32.pop %v1908
      %v1941 = vadd.f32 %v1909, 1.0
      %v1942 = vadd.f32 %v1910, 1.0
      %v1943 = vadd.f32 %v1911, 1.0
      %v1944 = vadd.f32 %v1912, 1.0
      %v1945 = vadd.f32 %v1913, 1.0
      %v1946 = vadd.f32 %v1914, 1.0
      %v1947 = vadd.f32 %v1915, 1.0
      %v1948 = vadd.f32 %v1916, 1.0
      %v1949 = vadd.f32 %v1917, 1.0
      %v1950 = vadd.f32 %v1918, 1.0
      %v1951 = vadd.f32 %v1919, 1.0
      %v1952 = vadd.f32 %v1920, 1.0
      %v1953 = vadd.f32 %v1921, 1.0
      %v1954 = vadd.f32 %v1922, 1.0
      %v1955 = vadd.f32 %v1923, 1.0
      %v1956 = vadd.f32 %v1924, 1.0
      %v1957 = vadd.f32 %v1925, 1.0
      %v1958 = vadd.f32 %v1926, 1.0
      %v1959 = vadd.f32 %v1927, 1.0
      %v1960 = vadd.f32 %v1928, 1.0
      %v1961 = vadd.f32 %v1929, 1.0
      %v1962 = vadd.f32 %v1930, 1.0
      %v1963 = vadd.f32 %v1931, 1.0
      %v1964 = vadd.f32 %v1932, 1.0
      %v1965 = vadd.f32 %v1933, 1.0
      %v1966 = vadd.f32 %v1934, 1.0
      %v1967 = vadd.f32 %v1935, 1.0
      %v1968 = vadd.f32 %v1936, 1.0
      %v1969 = vadd.f32 %v1937, 1.0
      %v1970 = vadd.f32 %v1938, 1.0
      %v1971 = vadd.f32 %v1939, 1.0
      %v1972 = vadd.f32 %v1940, 1.0
      %v1973 = vmul.f32 %v1845, %v1941
      %v1974 = vmul.f32 %v1846, %v1942
      %v1975 = vmul.f32 %v1847, %v1943
      %v1976 = vmul.f32 %v1848, %v1944
      %v1977 = vmul.f32 %v1849, %v1945
      %v1978 = vmul.f32 %v1850, %v1946
      %v1979 = vmul.f32 %v1851, %v1947
      %v1980 = vmul.f32 %v1852, %v1948
      %v1981 = vmul.f32 %v1853, %v1949
      %v1982 = vmul.f32 %v1854, %v1950
      %v1983 = vmul.f32 %v1855, %v1951
      %v1984 = vmul.f32 %v1856, %v1952
      %v1985 = vmul.f32 %v1857, %v1953
      %v1986 = vmul.f32 %v1858, %v1954
      %v1987 = vmul.f32 %v1859, %v1955
      %v1988 = vmul.f32 %v1860, %v1956
      %v1989 = vmul.f32 %v1861, %v1957
      %v1990 = vmul.f32 %v1862, %v1958
      %v1991 = vmul.f32 %v1863, %v1959
      %v1992 = vmul.f32 %v1864, %v1960
      %v1993 = vmul.f32 %v1865, %v1961
      %v1994 = vmul.f32 %v1866, %v1962
      %v1995 = vmul.f32 %v1867, %v1963
      %v1996 = vmul.f32 %v1868, %v1964
      %v1997 = vmul.f32 %v1869, %v1965
      %v1998 = vmul.f32 %v1870, %v1966
      %v1999 = vmul.f32 %v1871, %v1967
      %v2000 = vmul.f32 %v1872, %v1968
      %v2001 = vmul.f32 %v1873, %v1969
      %v2002 = vmul.f32 %v1874, %v1970
      %v2003 = vmul.f32 %v1875, %v1971
      %v2004 = vmul.f32 %v1876, %v1972
      %v2005 = vpack.c.bf16 %v1974, %v1973
      %v2006 = vpack.c.bf16 %v1976, %v1975
      %v2007 = vpack.c.bf16 %v1978, %v1977
      %v2008 = vpack.c.bf16 %v1980, %v1979
      %v2009 = vpack.c.bf16 %v1982, %v1981
      %v2010 = vpack.c.bf16 %v1984, %v1983
      %v2011 = vpack.c.bf16 %v1986, %v1985
      %v2012 = vpack.c.bf16 %v1988, %v1987
      %v2013 = vpack.c.bf16 %v1990, %v1989
      %v2014 = vpack.c.bf16 %v1992, %v1991
      %v2015 = vpack.c.bf16 %v1994, %v1993
      %v2016 = vpack.c.bf16 %v1996, %v1995
      %v2017 = vpack.c.bf16 %v1998, %v1997
      %v2018 = vpack.c.bf16 %v2000, %v1999
      %v2019 = vpack.c.bf16 %v2002, %v2001
      %v2020 = vpack.c.bf16 %v2004, %v2003
      %v2021 = vld [vmem:[%s5] sm:$0xf]
      %v2022 = vld [vmem:[%s5 + $0x4] sm:$0xf]
      %v2023 = vld [vmem:[%s5 + $0x8] sm:$0xf]
      %v2024 = vld [vmem:[%s5 + $0xc] sm:$0xf]
      %v2029 = vunpack.c.l.b16 %v2021
      %v2030 = vunpack.c.l.b16 %v2022
      %v2031 = vunpack.c.l.b16 %v2023
      %v2032 = vunpack.c.l.b16 %v2024
      %v2033 = vpack.c.b16 %v2030, %v2029
      %v2034 = vpack.c.b16 %v2032, %v2031
      %vm2037 = vcmask 261120
      %v2039 = vsel %vm2037, %v2005, 0
      %v2042 = vsel %vm2037, %v2006, 0
      %v2045 = vsel %vm2037, %v2007, 0
      %v2048 = vsel %vm2037, %v2008, 0
      %v2051 = vsel %vm2037, %v2009, 0
      %v2054 = vsel %vm2037, %v2010, 0
      %v2057 = vsel %vm2037, %v2011, 0
      %v2060 = vsel %vm2037, %v2012, 0
      %v2063 = vsel %vm2037, %v2013, 0
      %v2066 = vsel %vm2037, %v2014, 0
      %v2069 = vsel %vm2037, %v2015, 0
      %v2072 = vsel %vm2037, %v2016, 0
      %v2075 = vsel %vm2037, %v2017, 0
      %v2078 = vsel %vm2037, %v2018, 0
      %v2081 = vsel %vm2037, %v2019, 0
      %v2084 = vsel %vm2037, %v2020, 0
      %2086 = vmatprep.subr.bf16.mxu0 0
      %2087 = vmatpush1.bf16.msra.mxu0 %v2033
      %2088 = vmatprep.subr.bf16.mxu0 0
      %2089 = vmatpush1.bf16.msra.mxu0 %v2034
      %2090 = vmatprep.subr.bf16.mxu0 0
      %2091 = vmatpush1.bf16.msra.mxu0 0
      %2092 = vmatprep.subr.bf16.mxu0 0
      %2093 = vmatpush1.bf16.msra.mxu0 0
      %2094 = vmatprep.subr.bf16.mxu0 0
      %2095 = vmatpush1.bf16.msra.mxu0 0
      %2096 = vmatprep.subr.bf16.mxu0 0
      %2097 = vmatpush1.bf16.msra.mxu0 0
      %2098 = vmatprep.subr.bf16.mxu0 0
      %2099 = vmatpush1.bf16.msra.mxu0 0
      %2100 = vmatprep.subr.bf16.mxu0 0
      %2101 = vmatpush1.bf16.msra.mxu0 0
      %2102 = vmatprep.subr.bf16.mxu0 0
      %2103 = vmatpush1.bf16.msra.mxu0 0
      %2104 = vmatprep.subr.bf16.mxu0 0
      %2105 = vmatpush1.bf16.msra.mxu0 0
      %2106 = vmatprep.subr.bf16.mxu0 0
      %2107 = vmatpush1.bf16.msra.mxu0 0
      %2108 = vmatprep.subr.bf16.mxu0 0
      %2109 = vmatpush1.bf16.msra.mxu0 0
      %2110 = vmatprep.subr.bf16.mxu0 0
      %2111 = vmatpush1.bf16.msra.mxu0 0
      %2112 = vmatprep.subr.bf16.mxu0 0
      %2113 = vmatpush1.bf16.msra.mxu0 0
      %2114 = vmatprep.subr.bf16.mxu0 0
      %2115 = vmatpush1.bf16.msra.mxu0 0
      %2116 = vmatprep.subr.bf16.mxu0 0
      %2117 = vmatpush1.bf16.msra.mxu0 0
      %2118 = vmatprep.mubr.bf16.mxu0 0
      %2119 = vmatmul.mubr.bf16.gmra.mrb[0].mxu0 %v2039
      %v2120 = vpop.f32.mrb[0].mxu0
      %v2121 = vadd.f32 0.0, %v2120
      %v2122 = vpop.f32.mrb[0].mxu0
      %v2123 = vpop.f32.mrb[0].mxu0
      %v2124 = vadd.f32 0.0, %v2123
      %v2125 = vpop.f32.mrb[0].mxu0
      %2126 = vmatprep.mubr.bf16.mxu0 0
      %2127 = vmatmul.mubr.bf16.gmra.mrb[0].mxu0 %v2042
      %v2128 = vpop.f32.mrb[0].mxu0
      %v2129 = vadd.f32 0.0, %v2128
      %v2130 = vpop.f32.mrb[0].mxu0
      %v2131 = vpop.f32.mrb[0].mxu0
      %v2132 = vadd.f32 0.0, %v2131
      %v2133 = vpop.f32.mrb[0].mxu0
      %2134 = vmatprep.mubr.bf16.mxu0 0
      %2135 = vmatmul.mubr.bf16.gmra.mrb[0].mxu0 %v2045
      %v2136 = vpop.f32.mrb[0].mxu0
      %v2137 = vadd.f32 0.0, %v2136
      %v2138 = vpop.f32.mrb[0].mxu0
      %v2139 = vpop.f32.mrb[0].mxu0
      %v2140 = vadd.f32 0.0, %v2139
      %v2141 = vpop.f32.mrb[0].mxu0
      %2142 = vmatprep.mubr.bf16.mxu0 0
      %2143 = vmatmul.mubr.bf16.gmra.mrb[0].mxu0 %v2048
      %v2144 = vpop.f32.mrb[0].mxu0
      %v2145 = vadd.f32 0.0, %v2144
      %v2146 = vpop.f32.mrb[0].mxu0
      %v2147 = vpop.f32.mrb[0].mxu0
      %v2148 = vadd.f32 0.0, %v2147
      %v2149 = vpop.f32.mrb[0].mxu0
      %2150 = vmatprep.mubr.bf16.mxu0 0
      %2151 = vmatmul.mubr.bf16.gmra.mrb[0].mxu0 %v2051
      %v2152 = vpop.f32.mrb[0].mxu0
      %v2153 = vadd.f32 0.0, %v2152
      %v2154 = vpop.f32.mrb[0].mxu0
      %v2155 = vpop.f32.mrb[0].mxu0
      %v2156 = vadd.f32 0.0, %v2155
      %v2157 = vpop.f32.mrb[0].mxu0
      %2158 = vmatprep.mubr.bf16.mxu0 0
      %2159 = vmatmul.mubr.bf16.gmra.mrb[0].mxu0 %v2054
      %v2160 = vpop.f32.mrb[0].mxu0
      %v2161 = vadd.f32 0.0, %v2160
      %v2162 = vpop.f32.mrb[0].mxu0
      %v2163 = vpop.f32.mrb[0].mxu0
      %v2164 = vadd.f32 0.0, %v2163
      %v2165 = vpop.f32.mrb[0].mxu0
      %2166 = vmatprep.mubr.bf16.mxu0 0
      %2167 = vmatmul.mubr.bf16.gmra.mrb[0].mxu0 %v2057
      %v2168 = vpop.f32.mrb[0].mxu0
      %v2169 = vadd.f32 0.0, %v2168
      %v2170 = vpop.f32.mrb[0].mxu0
      %v2171 = vpop.f32.mrb[0].mxu0
      %v2172 = vadd.f32 0.0, %v2171
      %v2173 = vpop.f32.mrb[0].mxu0
      %2174 = vmatprep.mubr.bf16.mxu0 0
      %2175 = vmatmul.mubr.bf16.gmra.mrb[0].mxu0 %v2060
      %v2176 = vpop.f32.mrb[0].mxu0
      %v2177 = vadd.f32 0.0, %v2176
      %v2178 = vpop.f32.mrb[0].mxu0
      %v2179 = vpop.f32.mrb[0].mxu0
      %v2180 = vadd.f32 0.0, %v2179
      %v2181 = vpop.f32.mrb[0].mxu0
      %2182 = vmatprep.mubr.bf16.mxu0 0
      %2183 = vmatmul.mubr.bf16.gmra.mrb[0].mxu0 %v2063
      %v2184 = vpop.f32.mrb[0].mxu0
      %v2185 = vadd.f32 0.0, %v2184
      %v2186 = vpop.f32.mrb[0].mxu0
      %v2187 = vpop.f32.mrb[0].mxu0
      %v2188 = vadd.f32 0.0, %v2187
      %v2189 = vpop.f32.mrb[0].mxu0
      %2190 = vmatprep.mubr.bf16.mxu0 0
      %2191 = vmatmul.mubr.bf16.gmra.mrb[0].mxu0 %v2066
      %v2192 = vpop.f32.mrb[0].mxu0
      %v2193 = vadd.f32 0.0, %v2192
      %v2194 = vpop.f32.mrb[0].mxu0
      %v2195 = vpop.f32.mrb[0].mxu0
      %v2196 = vadd.f32 0.0, %v2195
      %v2197 = vpop.f32.mrb[0].mxu0
      %2198 = vmatprep.mubr.bf16.mxu0 0
      %2199 = vmatmul.mubr.bf16.gmra.mrb[0].mxu0 %v2069
      %v2200 = vpop.f32.mrb[0].mxu0
      %v2201 = vadd.f32 0.0, %v2200
      %v2202 = vpop.f32.mrb[0].mxu0
      %v2203 = vpop.f32.mrb[0].mxu0
      %v2204 = vadd.f32 0.0, %v2203
      %v2205 = vpop.f32.mrb[0].mxu0
      %2206 = vmatprep.mubr.bf16.mxu0 0
      %2207 = vmatmul.mubr.bf16.gmra.mrb[0].mxu0 %v2072
      %v2208 = vpop.f32.mrb[0].mxu0
      %v2209 = vadd.f32 0.0, %v2208
      %v2210 = vpop.f32.mrb[0].mxu0
      %v2211 = vpop.f32.mrb[0].mxu0
      %v2212 = vadd.f32 0.0, %v2211
      %v2213 = vpop.f32.mrb[0].mxu0
      %2214 = vmatprep.mubr.bf16.mxu0 0
      %2215 = vmatmul.mubr.bf16.gmra.mrb[0].mxu0 %v2075
      %v2216 = vpop.f32.mrb[0].mxu0
      %v2217 = vadd.f32 0.0, %v2216
      %v2218 = vpop.f32.mrb[0].mxu0
      %v2219 = vpop.f32.mrb[0].mxu0
      %v2220 = vadd.f32 0.0, %v2219
      %v2221 = vpop.f32.mrb[0].mxu0
      %2222 = vmatprep.mubr.bf16.mxu0 0
      %2223 = vmatmul.mubr.bf16.gmra.mrb[0].mxu0 %v2078
      %v2224 = vpop.f32.mrb[0].mxu0
      %v2225 = vadd.f32 0.0, %v2224
      %v2226 = vpop.f32.mrb[0].mxu0
      %v2227 = vpop.f32.mrb[0].mxu0
      %v2228 = vadd.f32 0.0, %v2227
      %v2229 = vpop.f32.mrb[0].mxu0
      %2230 = vmatprep.mubr.bf16.mxu0 0
      %2231 = vmatmul.mubr.bf16.gmra.mrb[0].mxu0 %v2081
      %v2232 = vpop.f32.mrb[0].mxu0
      %v2233 = vadd.f32 0.0, %v2232
      %v2234 = vpop.f32.mrb[0].mxu0
      %v2235 = vpop.f32.mrb[0].mxu0
      %v2236 = vadd.f32 0.0, %v2235
      %v2237 = vpop.f32.mrb[0].mxu0
      %2238 = vmatprep.mubr.bf16.mxu0 0
      %2239 = vmatmul.mubr.bf16.gmra.mrb[0].mxu0 %v2084
      %v2240 = vpop.f32.mrb[0].mxu0
      %v2241 = vadd.f32 0.0, %v2240
      %v2242 = vpop.f32.mrb[0].mxu0
      %v2243 = vpop.f32.mrb[0].mxu0
      %v2244 = vadd.f32 0.0, %v2243
      %v2245 = vpop.f32.mrb[0].mxu0
      %2246 = vdwg.mxu0
      %2247 = vst.msk [vmem:[%s418] sm:$0xff] %vm560, %v2121
      %2248 = vst.msk [vmem:[%s418 + $0x8] sm:$0xff] %vm560, %v2124
      %2249 = vst.msk [vmem:[%s418 + $0x10] sm:$0xff] %vm560, %v2129
      %2250 = vst.msk [vmem:[%s418 + $0x18] sm:$0xff] %vm560, %v2132
      %2251 = vst.msk [vmem:[%s418 + $0x20] sm:$0xff] %vm560, %v2137
      %2252 = vst.msk [vmem:[%s418 + $0x28] sm:$0xff] %vm560, %v2140
      %2253 = vst.msk [vmem:[%s418 + $0x30] sm:$0xff] %vm560, %v2145
      %2254 = vst.msk [vmem:[%s418 + $0x38] sm:$0xff] %vm560, %v2148
      %2255 = vst.msk [vmem:[%s418 + $0x40] sm:$0xff] %vm560, %v2153
      %2256 = vst.msk [vmem:[%s418 + $0x48] sm:$0xff] %vm560, %v2156
      %2257 = vst.msk [vmem:[%s418 + $0x50] sm:$0xff] %vm560, %v2161
      %2258 = vst.msk [vmem:[%s418 + $0x58] sm:$0xff] %vm560, %v2164
      %2259 = vst.msk [vmem:[%s418 + $0x60] sm:$0xff] %vm560, %v2169
      %2260 = vst.msk [vmem:[%s418 + $0x68] sm:$0xff] %vm560, %v2172
      %2261 = vst.msk [vmem:[%s418 + $0x70] sm:$0xff] %vm560, %v2177
      %2262 = vst.msk [vmem:[%s418 + $0x78] sm:$0xff] %vm560, %v2180
      %2263 = vst.msk [vmem:[%s418 + $0x80] sm:$0xff] %vm560, %v2185
      %2264 = vst.msk [vmem:[%s418 + $0x88] sm:$0xff] %vm560, %v2188
      %2265 = vst.msk [vmem:[%s418 + $0x90] sm:$0xff] %vm560, %v2193
      %2266 = vst.msk [vmem:[%s418 + $0x98] sm:$0xff] %vm560, %v2196
      %2267 = vst.msk [vmem:[%s418 + $0xa0] sm:$0xff] %vm560, %v2201
      %2268 = vst.msk [vmem:[%s418 + $0xa8] sm:$0xff] %vm560, %v2204
      %2269 = vst.msk [vmem:[%s418 + $0xb0] sm:$0xff] %vm560, %v2209
      %2270 = vst.msk [vmem:[%s418 + $0xb8] sm:$0xff] %vm560, %v2212
      %2271 = vst.msk [vmem:[%s418 + $0xc0] sm:$0xff] %vm560, %v2217
      %2272 = vst.msk [vmem:[%s418 + $0xc8] sm:$0xff] %vm560, %v2220
      %2273 = vst.msk [vmem:[%s418 + $0xd0] sm:$0xff] %vm560, %v2225
      %2274 = vst.msk [vmem:[%s418 + $0xd8] sm:$0xff] %vm560, %v2228
      %2275 = vst.msk [vmem:[%s418 + $0xe0] sm:$0xff] %vm560, %v2233
      %2276 = vst.msk [vmem:[%s418 + $0xe8] sm:$0xff] %vm560, %v2236
      %2277 = vst.msk [vmem:[%s418 + $0xf0] sm:$0xff] %vm560, %v2241
      %2278 = vst.msk [vmem:[%s418 + $0xf8] sm:$0xff] %vm560, %v2244
      %s2279 = smul.u32 16, %s22
      %p2280 = scmp.lt.s32.totalorder %s21, 1
      %s2281 = scalar_select %p2280, %s21, 1
      %p2282 = scmp.lt.s32.totalorder %s2279, 15
      %s2283 = scalar_select %p2282, %s2279, 15
      %s2284 = smul.addr %s2283, 2
      %s2285 = smul.addr %s2281, 32
      %s2286 = sadd.s32 %s2284, %s2285
      %s2287 = smul.addr %s2286, 8
      %s2288 = scalar_lea.vmem %s6, %s2287
      // Predicated region
      $region45: #{tpu_custom_call.1} parent=43 // pred_check
        %p2289 = pneg %p212
      $region46: #{tpu_custom_call.1} parent=43 // pred_check_branch
        %2291 = sbr.rel (%p2289) target = $region48
      $region47: #{tpu_custom_call.1} parent=43 // pred_region
        %s2292 = smul.u32 16, %s22
      $region48: #{tpu_custom_call.1} parent=43 // pred_fallthru
        _
    $region44: #{tpu_custom_call.1} parent=5 // pred_fallthru
      _
    %p2293 = scmp.le.s32.totalorder 2, %s12
    // Predicated region
    $region49: #{tpu_custom_call.1} parent=5 // pred_check
      %p2294 = pneg %p2293
    $region50: #{tpu_custom_call.1} parent=5 // pred_check_branch
      %2296 = sbr.rel (%p2294) target = $region52
    $region51: #{tpu_custom_call.1} parent=5 // pred_region
      %s2297 = ssub.s32 %s12, 2
      // Predicated region
      $region53: #{tpu_custom_call.1} parent=51 // pred_check
        %p2298 = pneg %p218
      $region54: #{tpu_custom_call.1} parent=51 // pred_check_branch
        %2300 = sbr.rel (%p2298) target = $region56
      $region55: #{tpu_custom_call.1} parent=51 // pred_region
        %s2301 = smul.u32 16, %s24
        %p2302 = scmp.lt.s32.totalorder %s23, 1
        %s2303 = scalar_select %p2302, %s23, 1
        %p2304 = scmp.lt.s32.totalorder %s2301, 15
        %s2305 = scalar_select %p2304, %s2301, 15
        %s2306 = smul.addr %s2305, 2
        %s2307 = smul.addr %s2303, 32
        %s2308 = sadd.s32 %s2306, %s2307
        %s2309 = smul.addr %s2308, 8
        %s2310 = scalar_lea.vmem %s6, %s2309
      $region56: #{tpu_custom_call.1} parent=51 // pred_fallthru
        _
    $region52: #{tpu_custom_call.1} parent=5 // pred_fallthru
      _
  $region6: #{tpu_custom_call.1} parent=0 // loop_footer
    %s16 = sadd.s32 1, %s12
  $region7: #{tpu_custom_call.1} parent=0 // loop_footer_branch
    %11 = sbr.rel target = $region3
  $region8: #{tpu_custom_call.1} parent=0 // loop_exit
    _

</llo_original>
